<compile_context>
chip_gen: v7x
topology: tpu7x:2x2x1
jax: 0.10.0
libtpu: 0.0.40
codegen_flags: <defaults>
</compile_context>

<pallas_src>
import functools

import jax
import jax.numpy as jnp
from jax.experimental import pallas as pl
from jax.experimental.pallas import tpu as pltpu


# ---------------------------------------------------------------------------
# Fused MHA kernel: per-head qkv matmuls + attention + fused merge/projection
# ---------------------------------------------------------------------------
def _fused_mha_kernel(x_ref, wq_ref, wk_ref, wv_ref, wproj_ref, bproj_ref,
                      o_ref, *, approx_recip):
    bb, P, D = x_ref.shape
    H, _, d = wq_ref.shape
    M = bb * P
    compute_dtype = wq_ref.dtype

    def cast(a):  # hoisted casts; no-op on the f32 parity path
        return a if a.dtype == compute_dtype else a.astype(compute_dtype)

    # One hoisted cast of the activation slab to the MXU operand dtype.
    # (bb, P, D) -> (bb*P, D) folds the batch into the matmul M dimension;
    # P is a whole sublane tile so this reshape is free.
    x = cast(x_ref[...].reshape(M, D))

    acc = jnp.zeros((M, D), jnp.float32)

    # Static unroll over heads (H is tiny for this demo config).
    # TODO(synk): for production H / head_dim use lax.fori_loop(..., unroll=True)
    # (or a grid axis over heads) to bound vreg live ranges, and tile P
    # flash-style for long sequences, budgeting tiles against v7x's 64 MiB
    # per-TC VMEM (not v5e/v6e's 128 MiB).
    for h in range(H):
        # Per-head weights indexed on the LEADING axis -> no lane slicing.
        wq = wq_ref[h]                               # (D, d), compute dtype
        wk = wk_ref[h]
        wv = wv_ref[h]

        # QKV projections on the full (bb*P, D) slab, f32 accumulation.
        # (The attention scale is pre-folded into wq in prepare_params.)
        q = jax.lax.dot_general(x, wq, (((1,), (0,)), ((), ())),
                                preferred_element_type=jnp.float32)
        k = jax.lax.dot_general(x, wk, (((1,), (0,)), ((), ())),
                                preferred_element_type=jnp.float32)
        v = jax.lax.dot_general(x, wv, (((1,), (0,)), ((), ())),
                                preferred_element_type=jnp.float32)

        # Attention is per batch element: view (M, d) as (bb, P, d) (free
        # sublane-tile split in f32, cast after the reshape) and batch the
        # score / PV matmuls over the bb batch elements of this block.
        q3 = cast(q.reshape(bb, P, d))
        k3 = cast(k.reshape(bb, P, d))
        v3 = cast(v.reshape(bb, P, d))

        s = jnp.einsum("bqd,bkd->bqk", q3, k3,
                       preferred_element_type=jnp.float32)       # (bb,P,P) f32
        s = s - jnp.max(s, axis=-1, keepdims=True)
        p = jnp.exp(s)
        denom = jnp.sum(p, axis=-1, keepdims=True)
        # Exact reciprocal on the f32 parity path; EUP approx on bf16 path.
        p = p * pl.reciprocal(denom, approx=approx_recip)

        o3 = jnp.einsum("bqk,bkd->bqd", cast(p), v3,
                        preferred_element_type=jnp.float32)      # (bb,P,d) f32

        # Head-merge fused into the projection (keeps the store lane-dense):
        #   concat_h(o_h) @ Wproj  ==  sum_h  o_h @ Wproj_heads[h]
        acc = acc + jax.lax.dot_general(
            cast(o3.reshape(M, d)), wproj_ref[h],
            (((1,), (0,)), ((), ())),
            preferred_element_type=jnp.float32)                  # (M, D)

    out = acc + bproj_ref[...].astype(jnp.float32)
    o_ref[...] = out.reshape(bb, P, D).astype(o_ref.dtype)


# ---------------------------------------------------------------------------
# Wrapper helpers
# ---------------------------------------------------------------------------
def _pick_block_batch(B, P, target_rows=256):
    """Batches folded per grid block: aim for >=256 matmul rows (v6e/v7x MXU;
    128 suffices on v5e) while keeping >=2 parallel grid blocks when B >= 2 so
    both v7x TensorCores get work."""
    bb = max(1, min(B, target_rows // max(P, 1)))
    if B >= 2:
        bb = max(1, min(bb, B // 2))
    while B % bb:          # block must evenly divide the batch
        bb -= 1
    return bb


def _vmem_limit_bytes(bb, P, D, H, d, weight_itemsize):
    """Generous VMEM budget derived from the actual (lane-padded) footprint,
    clamped well below v7x's 64 MiB physical VMEM per TensorCore."""
    def pad(n, m):
        return -(-n // m) * m

    blk = bb * pad(P, 8) * pad(D, 128) * 4                         # x / out (f32)
    wts = (3 * H * pad(D, 8) * pad(d, 128)                         # Wq/Wk/Wv heads
           + H * pad(d, 8) * pad(D, 128)) * weight_itemsize        # Wproj heads
    bias = pad(D, 128) * 4
    interm = bb * pad(P, 8) * (3 * pad(d, 128) + pad(P, 128)
                               + 2 * pad(D, 128)) * 4
    total = 2 * (2 * blk) + 2 * (wts + bias) + interm              # double-buffered
    return int(min(max(4 * total, 8 << 20), 48 << 20))


def prepare_params(torch_params, num_heads, compute_dtype=jnp.bfloat16):
    """One-time (outside the hot path) conversion of PyTorch-layout params.

    * w_qkv (3D, D) -> per-head Wq/Wk/Wv of shape (H, D, d): heads indexed on
      the leading axis inside the kernel (no lane-granular slicing).
    * The attention scale 1/sqrt(d) is folded into the Q weights.
    * w_proj (D, D) -> (H, d, D) so the head-merge fuses into the projection.
    * Matmul operands default to bf16 on every generation (the MXU is natively
      bf16 on v5e/v6e/v7x); accumulation / softmax stay f32 inside the kernel.
    """
    w_qkv = jnp.asarray(torch_params["w_qkv"], jnp.float32)        # (3D, D)
    d_model = w_qkv.shape[1]
    head_dim = d_model // num_heads
    scale = float(head_dim) ** (-0.5)

    # PyTorch qkv rows are ordered (C, H, d); columns are the input features.
    w_qkv = w_qkv.reshape(3, num_heads, head_dim, d_model)          # [c,h,dd,i]
    w_qkv = jnp.transpose(w_qkv, (0, 1, 3, 2))                      # (3,H,D,d)
    w_q = w_qkv[0] * scale                                          # fold scale
    w_k = w_qkv[1]
    w_v = w_qkv[2]

    w_proj = jnp.asarray(torch_params["w_proj"], jnp.float32)       # (out, in)
    w_proj = w_proj.T.reshape(num_heads, head_dim, d_model)         # (H, d, D)

    return {
        "w_q_heads": w_q.astype(compute_dtype),
        "w_k_heads": w_k.astype(compute_dtype),
        "w_v_heads": w_v.astype(compute_dtype),
        "w_proj_heads": w_proj.astype(compute_dtype),
        "b_proj": jnp.asarray(torch_params["b_proj"], jnp.float32).reshape(1, -1),
    }


def multi_head_attention(x, params, num_heads, *, block_batch=None):
    """x: (B, P, D); params from prepare_params(). Returns (B, P, D)."""
    B, P, D = x.shape
    w_q = params["w_q_heads"]          # (H, D, d)
    w_k = params["w_k_heads"]
    w_v = params["w_v_heads"]
    w_proj = params["w_proj_heads"]    # (H, d, D)
    b_proj = params["b_proj"]          # (1, D)
    H, _, d = w_q.shape
    assert H == num_heads and H * d == D

    compute_dtype = w_q.dtype
    bb = block_batch if block_batch is not None else _pick_block_batch(B, P)
    n_blocks = B // bb

    kernel = functools.partial(
        _fused_mha_kernel,
        approx_recip=(compute_dtype != jnp.float32))

    # NOTE: the weight/bias specs have constant index_maps (fully resident);
    # at production D consider single-buffering them (pipeline_mode) to halve
    # their VMEM residency against v7x's 64 MiB budget.
    return pl.pallas_call(
        kernel,
        out_shape=jax.ShapeDtypeStruct((B, P, D), x.dtype),
        grid=(n_blocks,),
        in_specs=[
            pl.BlockSpec((bb, P, D), lambda i: (i, 0, 0)),   # x slab
            pl.BlockSpec((H, D, d), lambda i: (0, 0, 0)),    # Wq heads (resident)
            pl.BlockSpec((H, D, d), lambda i: (0, 0, 0)),    # Wk heads (resident)
            pl.BlockSpec((H, D, d), lambda i: (0, 0, 0)),    # Wv heads (resident)
            pl.BlockSpec((H, d, D), lambda i: (0, 0, 0)),    # Wproj heads (resident)
            pl.BlockSpec((1, D), lambda i: (0, 0)),          # bias
        ],
        out_specs=pl.BlockSpec((bb, P, D), lambda i: (i, 0, 0)),
        compiler_params=pltpu.CompilerParams(
            dimension_semantics=("parallel",),   # shards blocks over v7x's 2 TCs
            vmem_limit_bytes=_vmem_limit_bytes(
                bb, P, D, H, d, jnp.dtype(compute_dtype).itemsize),
        ),
    )(x, w_q, w_k, w_v, w_proj, b_proj)


# ---------------------------------------------------------------------------
# Pure-JAX reference (PyTorch-layout params) for correctness checking
# ---------------------------------------------------------------------------
def reference_mha(x, torch_params, num_heads):
    B, P, D = x.shape
    d = D // num_heads
    qkv = x @ torch_params["w_qkv"].T
    qkv = qkv.reshape(B, P, 3, num_heads, d).transpose(2, 0, 3, 1, 4)
    q, k, v = qkv[0], qkv[1], qkv[2]
    attn = jnp.einsum("bhpd,bhqd->bhpq", q, k) * (d ** -0.5)
    attn = jax.nn.softmax(attn, axis=-1)
    o = jnp.einsum("bhpq,bhqd->bhpd", attn, v)
    o = o.transpose(0, 2, 1, 3).reshape(B, P, D)
    return o @ torch_params["w_proj"].T + torch_params["b_proj"]


if __name__ == "__main__":
    B, P, num_heads, head_dim = 2, 8, 6, 8
    D = num_heads * head_dim  # 48

    key = jax.random.PRNGKey(0)
    kx, kqkv, kw, kb = jax.random.split(key, 4)

    x = jax.random.normal(kx, (B, P, D), dtype=jnp.float32)
    torch_params = {
        "w_qkv": jax.random.normal(kqkv, (3 * D, D), dtype=jnp.float32) * 0.05,
        "w_proj": jax.random.normal(kw, (D, D), dtype=jnp.float32) * 0.05,
        "b_proj": jax.random.normal(kb, (D,), dtype=jnp.float32) * 0.05,
    }

    ref = reference_mha(x, torch_params, num_heads)

    # Default path: bf16 matmul operands on all generations, f32 accumulation
    # and f32 softmax inside the kernel.
    params_bf16 = prepare_params(torch_params, num_heads)
    out = jax.block_until_ready(multi_head_attention(x, params_bf16, num_heads))
    assert out.shape == (B, P, D)
    assert jnp.allclose(out, ref, atol=3e-2, rtol=3e-2), "bf16 mismatch vs reference"

    # f32 parity path (exact reciprocal in the softmax normalization).
    params_f32 = prepare_params(torch_params, num_heads,
                                compute_dtype=jnp.float32)
    out_f32 = jax.block_until_ready(
        multi_head_attention(x, params_f32, num_heads))
    assert jnp.allclose(out_f32, ref, atol=2e-3, rtol=2e-3), "f32 mismatch vs reference"

    print("KERNEL_OK")
</pallas_src>

<mosaic_0001>
module attributes {stable_mosaic.version = 11 : i64} {
  func.func @_fused_mha_kernel(%arg0: i32, %arg1: memref<1x8x48xf32, #tpu.memory_space<vmem>>, %arg2: memref<6x48x8xbf16, #tpu.memory_space<vmem>>, %arg3: memref<6x48x8xbf16, #tpu.memory_space<vmem>>, %arg4: memref<6x48x8xbf16, #tpu.memory_space<vmem>>, %arg5: memref<6x8x48xbf16, #tpu.memory_space<vmem>>, %arg6: memref<1x48xf32, #tpu.memory_space<vmem>>, %arg7: memref<1x8x48xf32, #tpu.memory_space<vmem>>) attributes {dimension_semantics = [#tpu.dimension_semantics<parallel>], iteration_bounds = array<i64: 2>, scalar_prefetch = 0 : i64, scratch_operands = 0 : i64, tpu.core_type = #tpu.core_type<tc>, window_params = [{transform_indices = @transform_0, window_bounds = array<i64: 1, 8, 48>}, {pipeline_mode = #tpu.pipeline_mode<synchronous>, transform_indices = @transform_1, window_bounds = array<i64: 6, 48, 8>}, {pipeline_mode = #tpu.pipeline_mode<synchronous>, transform_indices = @transform_2, window_bounds = array<i64: 6, 48, 8>}, {pipeline_mode = #tpu.pipeline_mode<synchronous>, transform_indices = @transform_3, window_bounds = array<i64: 6, 48, 8>}, {pipeline_mode = #tpu.pipeline_mode<synchronous>, transform_indices = @transform_4, window_bounds = array<i64: 6, 8, 48>}, {pipeline_mode = #tpu.pipeline_mode<synchronous>, transform_indices = @transform_5, window_bounds = array<i64: 1, 48>}, {transform_indices = @transform_6, window_bounds = array<i64: 1, 8, 48>}]} {
    %c0 = arith.constant 0 : index
    %c0_0 = arith.constant 0 : index
    %c0_1 = arith.constant 0 : index
    %0 = vector.load %arg1[%c0, %c0_0, %c0_1] : memref<1x8x48xf32, #tpu.memory_space<vmem>>, vector<1x8x48xf32>
    %1 = vector.shape_cast %0 : vector<1x8x48xf32> to vector<8x48xf32>
    %2 = arith.truncf %1 : vector<8x48xf32> to vector<8x48xbf16>
    %cst = arith.constant 0.000000e+00 : f32
    %3 = vector.broadcast %cst : f32 to vector<8x48xf32>
    %c0_2 = arith.constant 0 : index
    %c0_3 = arith.constant 0 : index
    %c0_4 = arith.constant 0 : index
    %4 = vector.load %arg2[%c0_2, %c0_3, %c0_4] : memref<6x48x8xbf16, #tpu.memory_space<vmem>>, vector<1x48x8xbf16>
    %5 = vector.shape_cast %4 : vector<1x48x8xbf16> to vector<48x8xbf16>
    %c0_5 = arith.constant 0 : index
    %c0_6 = arith.constant 0 : index
    %c0_7 = arith.constant 0 : index
    %6 = vector.load %arg3[%c0_5, %c0_6, %c0_7] : memref<6x48x8xbf16, #tpu.memory_space<vmem>>, vector<1x48x8xbf16>
    %7 = vector.shape_cast %6 : vector<1x48x8xbf16> to vector<48x8xbf16>
    %c0_8 = arith.constant 0 : index
    %c0_9 = arith.constant 0 : index
    %c0_10 = arith.constant 0 : index
    %8 = vector.load %arg4[%c0_8, %c0_9, %c0_10] : memref<6x48x8xbf16, #tpu.memory_space<vmem>>, vector<1x48x8xbf16>
    %9 = vector.shape_cast %8 : vector<1x48x8xbf16> to vector<48x8xbf16>
    %cst_11 = arith.constant dense<0.000000e+00> : vector<8x8xf32>
    %10 = tpu.matmul %2, %5, %cst_11 {dimension_numbers = #tpu.dot_dimension_numbers<[1], [0], [0], [1], [0, 0, 1, 1], [], []>} : vector<8x48xbf16>, vector<48x8xbf16>, vector<8x8xf32> -> vector<8x8xf32>
    %cst_12 = arith.constant dense<0.000000e+00> : vector<8x8xf32>
    %11 = tpu.matmul %2, %7, %cst_12 {dimension_numbers = #tpu.dot_dimension_numbers<[1], [0], [0], [1], [0, 0, 1, 1], [], []>} : vector<8x48xbf16>, vector<48x8xbf16>, vector<8x8xf32> -> vector<8x8xf32>
    %cst_13 = arith.constant dense<0.000000e+00> : vector<8x8xf32>
    %12 = tpu.matmul %2, %9, %cst_13 {dimension_numbers = #tpu.dot_dimension_numbers<[1], [0], [0], [1], [0, 0, 1, 1], [], []>} : vector<8x48xbf16>, vector<48x8xbf16>, vector<8x8xf32> -> vector<8x8xf32>
    %13 = vector.shape_cast %10 : vector<8x8xf32> to vector<1x8x8xf32>
    %14 = arith.truncf %13 : vector<1x8x8xf32> to vector<1x8x8xbf16>
    %15 = vector.shape_cast %11 : vector<8x8xf32> to vector<1x8x8xf32>
    %16 = arith.truncf %15 : vector<1x8x8xf32> to vector<1x8x8xbf16>
    %17 = vector.shape_cast %12 : vector<8x8xf32> to vector<1x8x8xf32>
    %18 = arith.truncf %17 : vector<1x8x8xf32> to vector<1x8x8xbf16>
    "tpu.trace_start"() <{level = 10 : i32, message = "bqd,bkd->bqk"}> : () -> ()
    %cst_14 = arith.constant dense<0.000000e+00> : vector<1x8x8xf32>
    %19 = tpu.matmul %14, %16, %cst_14 {dimension_numbers = #tpu.dot_dimension_numbers<[2], [2], [1], [1], [0, 0, 0, 1, 1, 1], [0], [0]>} : vector<1x8x8xbf16>, vector<1x8x8xbf16>, vector<1x8x8xf32> -> vector<1x8x8xf32>
    "tpu.trace_stop"() : () -> ()
    %cst_15 = arith.constant dense<0xFF800000> : vector<1x8xf32>
    %20 = vector.multi_reduction <maximumf>, %19, %cst_15 [2] : vector<1x8x8xf32> to vector<1x8xf32>
    %21 = vector.shape_cast %20 : vector<1x8xf32> to vector<1x8x1xf32>
    %22 = vector.broadcast %21 : vector<1x8x1xf32> to vector<1x8x8xf32>
    %23 = arith.subf %19, %22 : vector<1x8x8xf32>
    %24 = math.exp %23 : vector<1x8x8xf32>
    %cst_16 = arith.constant dense<0.000000e+00> : vector<1x8xf32>
    %25 = vector.multi_reduction <add>, %24, %cst_16 [2] : vector<1x8x8xf32> to vector<1x8xf32>
    %26 = vector.shape_cast %25 : vector<1x8xf32> to vector<1x8x1xf32>
    %27 = tpu.reciprocal %26 {approx = true} : vector<1x8x1xf32> -> vector<1x8x1xf32>
    %28 = vector.broadcast %27 : vector<1x8x1xf32> to vector<1x8x8xf32>
    %29 = arith.mulf %24, %28 : vector<1x8x8xf32>
    %30 = arith.truncf %29 : vector<1x8x8xf32> to vector<1x8x8xbf16>
    "tpu.trace_start"() <{level = 10 : i32, message = "bqk,bkd->bqd"}> : () -> ()
    %cst_17 = arith.constant dense<0.000000e+00> : vector<1x8x8xf32>
    %31 = tpu.matmul %30, %18, %cst_17 {dimension_numbers = #tpu.dot_dimension_numbers<[2], [1], [1], [2], [0, 0, 0, 1, 1, 2], [0], [0]>} : vector<1x8x8xbf16>, vector<1x8x8xbf16>, vector<1x8x8xf32> -> vector<1x8x8xf32>
    "tpu.trace_stop"() : () -> ()
    %32 = vector.shape_cast %31 : vector<1x8x8xf32> to vector<8x8xf32>
    %33 = arith.truncf %32 : vector<8x8xf32> to vector<8x8xbf16>
    %c0_18 = arith.constant 0 : index
    %c0_19 = arith.constant 0 : index
    %c0_20 = arith.constant 0 : index
    %34 = vector.load %arg5[%c0_18, %c0_19, %c0_20] : memref<6x8x48xbf16, #tpu.memory_space<vmem>>, vector<1x8x48xbf16>
    %35 = vector.shape_cast %34 : vector<1x8x48xbf16> to vector<8x48xbf16>
    %cst_21 = arith.constant dense<0.000000e+00> : vector<8x48xf32>
    %36 = tpu.matmul %33, %35, %cst_21 {dimension_numbers = #tpu.dot_dimension_numbers<[1], [0], [0], [1], [0, 0, 1, 1], [], []>} : vector<8x8xbf16>, vector<8x48xbf16>, vector<8x48xf32> -> vector<8x48xf32>
    %37 = arith.addf %3, %36 : vector<8x48xf32>
    %c1 = arith.constant 1 : index
    %c0_22 = arith.constant 0 : index
    %c0_23 = arith.constant 0 : index
    %38 = vector.load %arg2[%c1, %c0_22, %c0_23] : memref<6x48x8xbf16, #tpu.memory_space<vmem>>, vector<1x48x8xbf16>
    %39 = vector.shape_cast %38 : vector<1x48x8xbf16> to vector<48x8xbf16>
    %c1_24 = arith.constant 1 : index
    %c0_25 = arith.constant 0 : index
    %c0_26 = arith.constant 0 : index
    %40 = vector.load %arg3[%c1_24, %c0_25, %c0_26] : memref<6x48x8xbf16, #tpu.memory_space<vmem>>, vector<1x48x8xbf16>
    %41 = vector.shape_cast %40 : vector<1x48x8xbf16> to vector<48x8xbf16>
    %c1_27 = arith.constant 1 : index
    %c0_28 = arith.constant 0 : index
    %c0_29 = arith.constant 0 : index
    %42 = vector.load %arg4[%c1_27, %c0_28, %c0_29] : memref<6x48x8xbf16, #tpu.memory_space<vmem>>, vector<1x48x8xbf16>
    %43 = vector.shape_cast %42 : vector<1x48x8xbf16> to vector<48x8xbf16>
    %cst_30 = arith.constant dense<0.000000e+00> : vector<8x8xf32>
    %44 = tpu.matmul %2, %39, %cst_30 {dimension_numbers = #tpu.dot_dimension_numbers<[1], [0], [0], [1], [0, 0, 1, 1], [], []>} : vector<8x48xbf16>, vector<48x8xbf16>, vector<8x8xf32> -> vector<8x8xf32>
    %cst_31 = arith.constant dense<0.000000e+00> : vector<8x8xf32>
    %45 = tpu.matmul %2, %41, %cst_31 {dimension_numbers = #tpu.dot_dimension_numbers<[1], [0], [0], [1], [0, 0, 1, 1], [], []>} : vector<8x48xbf16>, vector<48x8xbf16>, vector<8x8xf32> -> vector<8x8xf32>
    %cst_32 = arith.constant dense<0.000000e+00> : vector<8x8xf32>
    %46 = tpu.matmul %2, %43, %cst_32 {dimension_numbers = #tpu.dot_dimension_numbers<[1], [0], [0], [1], [0, 0, 1, 1], [], []>} : vector<8x48xbf16>, vector<48x8xbf16>, vector<8x8xf32> -> vector<8x8xf32>
    %47 = vector.shape_cast %44 : vector<8x8xf32> to vector<1x8x8xf32>
    %48 = arith.truncf %47 : vector<1x8x8xf32> to vector<1x8x8xbf16>
    %49 = vector.shape_cast %45 : vector<8x8xf32> to vector<1x8x8xf32>
    %50 = arith.truncf %49 : vector<1x8x8xf32> to vector<1x8x8xbf16>
    %51 = vector.shape_cast %46 : vector<8x8xf32> to vector<1x8x8xf32>
    %52 = arith.truncf %51 : vector<1x8x8xf32> to vector<1x8x8xbf16>
    "tpu.trace_start"() <{level = 10 : i32, message = "bqd,bkd->bqk"}> : () -> ()
    %cst_33 = arith.constant dense<0.000000e+00> : vector<1x8x8xf32>
    %53 = tpu.matmul %48, %50, %cst_33 {dimension_numbers = #tpu.dot_dimension_numbers<[2], [2], [1], [1], [0, 0, 0, 1, 1, 1], [0], [0]>} : vector<1x8x8xbf16>, vector<1x8x8xbf16>, vector<1x8x8xf32> -> vector<1x8x8xf32>
    "tpu.trace_stop"() : () -> ()
    %cst_34 = arith.constant dense<0xFF800000> : vector<1x8xf32>
    %54 = vector.multi_reduction <maximumf>, %53, %cst_34 [2] : vector<1x8x8xf32> to vector<1x8xf32>
    %55 = vector.shape_cast %54 : vector<1x8xf32> to vector<1x8x1xf32>
    %56 = vector.broadcast %55 : vector<1x8x1xf32> to vector<1x8x8xf32>
    %57 = arith.subf %53, %56 : vector<1x8x8xf32>
    %58 = math.exp %57 : vector<1x8x8xf32>
    %cst_35 = arith.constant dense<0.000000e+00> : vector<1x8xf32>
    %59 = vector.multi_reduction <add>, %58, %cst_35 [2] : vector<1x8x8xf32> to vector<1x8xf32>
    %60 = vector.shape_cast %59 : vector<1x8xf32> to vector<1x8x1xf32>
    %61 = tpu.reciprocal %60 {approx = true} : vector<1x8x1xf32> -> vector<1x8x1xf32>
    %62 = vector.broadcast %61 : vector<1x8x1xf32> to vector<1x8x8xf32>
    %63 = arith.mulf %58, %62 : vector<1x8x8xf32>
    %64 = arith.truncf %63 : vector<1x8x8xf32> to vector<1x8x8xbf16>
    "tpu.trace_start"() <{level = 10 : i32, message = "bqk,bkd->bqd"}> : () -> ()
    %cst_36 = arith.constant dense<0.000000e+00> : vector<1x8x8xf32>
    %65 = tpu.matmul %64, %52, %cst_36 {dimension_numbers = #tpu.dot_dimension_numbers<[2], [1], [1], [2], [0, 0, 0, 1, 1, 2], [0], [0]>} : vector<1x8x8xbf16>, vector<1x8x8xbf16>, vector<1x8x8xf32> -> vector<1x8x8xf32>
    "tpu.trace_stop"() : () -> ()
    %66 = vector.shape_cast %65 : vector<1x8x8xf32> to vector<8x8xf32>
    %67 = arith.truncf %66 : vector<8x8xf32> to vector<8x8xbf16>
    %c1_37 = arith.constant 1 : index
    %c0_38 = arith.constant 0 : index
    %c0_39 = arith.constant 0 : index
    %68 = vector.load %arg5[%c1_37, %c0_38, %c0_39] : memref<6x8x48xbf16, #tpu.memory_space<vmem>>, vector<1x8x48xbf16>
    %69 = vector.shape_cast %68 : vector<1x8x48xbf16> to vector<8x48xbf16>
    %cst_40 = arith.constant dense<0.000000e+00> : vector<8x48xf32>
    %70 = tpu.matmul %67, %69, %cst_40 {dimension_numbers = #tpu.dot_dimension_numbers<[1], [0], [0], [1], [0, 0, 1, 1], [], []>} : vector<8x8xbf16>, vector<8x48xbf16>, vector<8x48xf32> -> vector<8x48xf32>
    %71 = arith.addf %37, %70 : vector<8x48xf32>
    %c2 = arith.constant 2 : index
    %c0_41 = arith.constant 0 : index
    %c0_42 = arith.constant 0 : index
    %72 = vector.load %arg2[%c2, %c0_41, %c0_42] : memref<6x48x8xbf16, #tpu.memory_space<vmem>>, vector<1x48x8xbf16>
    %73 = vector.shape_cast %72 : vector<1x48x8xbf16> to vector<48x8xbf16>
    %c2_43 = arith.constant 2 : index
    %c0_44 = arith.constant 0 : index
    %c0_45 = arith.constant 0 : index
    %74 = vector.load %arg3[%c2_43, %c0_44, %c0_45] : memref<6x48x8xbf16, #tpu.memory_space<vmem>>, vector<1x48x8xbf16>
    %75 = vector.shape_cast %74 : vector<1x48x8xbf16> to vector<48x8xbf16>
    %c2_46 = arith.constant 2 : index
    %c0_47 = arith.constant 0 : index
    %c0_48 = arith.constant 0 : index
    %76 = vector.load %arg4[%c2_46, %c0_47, %c0_48] : memref<6x48x8xbf16, #tpu.memory_space<vmem>>, vector<1x48x8xbf16>
    %77 = vector.shape_cast %76 : vector<1x48x8xbf16> to vector<48x8xbf16>
    %cst_49 = arith.constant dense<0.000000e+00> : vector<8x8xf32>
    %78 = tpu.matmul %2, %73, %cst_49 {dimension_numbers = #tpu.dot_dimension_numbers<[1], [0], [0], [1], [0, 0, 1, 1], [], []>} : vector<8x48xbf16>, vector<48x8xbf16>, vector<8x8xf32> -> vector<8x8xf32>
    %cst_50 = arith.constant dense<0.000000e+00> : vector<8x8xf32>
    %79 = tpu.matmul %2, %75, %cst_50 {dimension_numbers = #tpu.dot_dimension_numbers<[1], [0], [0], [1], [0, 0, 1, 1], [], []>} : vector<8x48xbf16>, vector<48x8xbf16>, vector<8x8xf32> -> vector<8x8xf32>
    %cst_51 = arith.constant dense<0.000000e+00> : vector<8x8xf32>
    %80 = tpu.matmul %2, %77, %cst_51 {dimension_numbers = #tpu.dot_dimension_numbers<[1], [0], [0], [1], [0, 0, 1, 1], [], []>} : vector<8x48xbf16>, vector<48x8xbf16>, vector<8x8xf32> -> vector<8x8xf32>
    %81 = vector.shape_cast %78 : vector<8x8xf32> to vector<1x8x8xf32>
    %82 = arith.truncf %81 : vector<1x8x8xf32> to vector<1x8x8xbf16>
    %83 = vector.shape_cast %79 : vector<8x8xf32> to vector<1x8x8xf32>
    %84 = arith.truncf %83 : vector<1x8x8xf32> to vector<1x8x8xbf16>
    %85 = vector.shape_cast %80 : vector<8x8xf32> to vector<1x8x8xf32>
    %86 = arith.truncf %85 : vector<1x8x8xf32> to vector<1x8x8xbf16>
    "tpu.trace_start"() <{level = 10 : i32, message = "bqd,bkd->bqk"}> : () -> ()
    %cst_52 = arith.constant dense<0.000000e+00> : vector<1x8x8xf32>
    %87 = tpu.matmul %82, %84, %cst_52 {dimension_numbers = #tpu.dot_dimension_numbers<[2], [2], [1], [1], [0, 0, 0, 1, 1, 1], [0], [0]>} : vector<1x8x8xbf16>, vector<1x8x8xbf16>, vector<1x8x8xf32> -> vector<1x8x8xf32>
    "tpu.trace_stop"() : () -> ()
    %cst_53 = arith.constant dense<0xFF800000> : vector<1x8xf32>
    %88 = vector.multi_reduction <maximumf>, %87, %cst_53 [2] : vector<1x8x8xf32> to vector<1x8xf32>
    %89 = vector.shape_cast %88 : vector<1x8xf32> to vector<1x8x1xf32>
    %90 = vector.broadcast %89 : vector<1x8x1xf32> to vector<1x8x8xf32>
    %91 = arith.subf %87, %90 : vector<1x8x8xf32>
    %92 = math.exp %91 : vector<1x8x8xf32>
    %cst_54 = arith.constant dense<0.000000e+00> : vector<1x8xf32>
    %93 = vector.multi_reduction <add>, %92, %cst_54 [2] : vector<1x8x8xf32> to vector<1x8xf32>
    %94 = vector.shape_cast %93 : vector<1x8xf32> to vector<1x8x1xf32>
    %95 = tpu.reciprocal %94 {approx = true} : vector<1x8x1xf32> -> vector<1x8x1xf32>
    %96 = vector.broadcast %95 : vector<1x8x1xf32> to vector<1x8x8xf32>
    %97 = arith.mulf %92, %96 : vector<1x8x8xf32>
    %98 = arith.truncf %97 : vector<1x8x8xf32> to vector<1x8x8xbf16>
    "tpu.trace_start"() <{level = 10 : i32, message = "bqk,bkd->bqd"}> : () -> ()
    %cst_55 = arith.constant dense<0.000000e+00> : vector<1x8x8xf32>
    %99 = tpu.matmul %98, %86, %cst_55 {dimension_numbers = #tpu.dot_dimension_numbers<[2], [1], [1], [2], [0, 0, 0, 1, 1, 2], [0], [0]>} : vector<1x8x8xbf16>, vector<1x8x8xbf16>, vector<1x8x8xf32> -> vector<1x8x8xf32>
    "tpu.trace_stop"() : () -> ()
    %100 = vector.shape_cast %99 : vector<1x8x8xf32> to vector<8x8xf32>
    %101 = arith.truncf %100 : vector<8x8xf32> to vector<8x8xbf16>
    %c2_56 = arith.constant 2 : index
    %c0_57 = arith.constant 0 : index
    %c0_58 = arith.constant 0 : index
    %102 = vector.load %arg5[%c2_56, %c0_57, %c0_58] : memref<6x8x48xbf16, #tpu.memory_space<vmem>>, vector<1x8x48xbf16>
    %103 = vector.shape_cast %102 : vector<1x8x48xbf16> to vector<8x48xbf16>
    %cst_59 = arith.constant dense<0.000000e+00> : vector<8x48xf32>
    %104 = tpu.matmul %101, %103, %cst_59 {dimension_numbers = #tpu.dot_dimension_numbers<[1], [0], [0], [1], [0, 0, 1, 1], [], []>} : vector<8x8xbf16>, vector<8x48xbf16>, vector<8x48xf32> -> vector<8x48xf32>
    %105 = arith.addf %71, %104 : vector<8x48xf32>
    %c3 = arith.constant 3 : index
    %c0_60 = arith.constant 0 : index
    %c0_61 = arith.constant 0 : index
    %106 = vector.load %arg2[%c3, %c0_60, %c0_61] : memref<6x48x8xbf16, #tpu.memory_space<vmem>>, vector<1x48x8xbf16>
    %107 = vector.shape_cast %106 : vector<1x48x8xbf16> to vector<48x8xbf16>
    %c3_62 = arith.constant 3 : index
    %c0_63 = arith.constant 0 : index
    %c0_64 = arith.constant 0 : index
    %108 = vector.load %arg3[%c3_62, %c0_63, %c0_64] : memref<6x48x8xbf16, #tpu.memory_space<vmem>>, vector<1x48x8xbf16>
    %109 = vector.shape_cast %108 : vector<1x48x8xbf16> to vector<48x8xbf16>
    %c3_65 = arith.constant 3 : index
    %c0_66 = arith.constant 0 : index
    %c0_67 = arith.constant 0 : index
    %110 = vector.load %arg4[%c3_65, %c0_66, %c0_67] : memref<6x48x8xbf16, #tpu.memory_space<vmem>>, vector<1x48x8xbf16>
    %111 = vector.shape_cast %110 : vector<1x48x8xbf16> to vector<48x8xbf16>
    %cst_68 = arith.constant dense<0.000000e+00> : vector<8x8xf32>
    %112 = tpu.matmul %2, %107, %cst_68 {dimension_numbers = #tpu.dot_dimension_numbers<[1], [0], [0], [1], [0, 0, 1, 1], [], []>} : vector<8x48xbf16>, vector<48x8xbf16>, vector<8x8xf32> -> vector<8x8xf32>
    %cst_69 = arith.constant dense<0.000000e+00> : vector<8x8xf32>
    %113 = tpu.matmul %2, %109, %cst_69 {dimension_numbers = #tpu.dot_dimension_numbers<[1], [0], [0], [1], [0, 0, 1, 1], [], []>} : vector<8x48xbf16>, vector<48x8xbf16>, vector<8x8xf32> -> vector<8x8xf32>
    %cst_70 = arith.constant dense<0.000000e+00> : vector<8x8xf32>
    %114 = tpu.matmul %2, %111, %cst_70 {dimension_numbers = #tpu.dot_dimension_numbers<[1], [0], [0], [1], [0, 0, 1, 1], [], []>} : vector<8x48xbf16>, vector<48x8xbf16>, vector<8x8xf32> -> vector<8x8xf32>
    %115 = vector.shape_cast %112 : vector<8x8xf32> to vector<1x8x8xf32>
    %116 = arith.truncf %115 : vector<1x8x8xf32> to vector<1x8x8xbf16>
    %117 = vector.shape_cast %113 : vector<8x8xf32> to vector<1x8x8xf32>
    %118 = arith.truncf %117 : vector<1x8x8xf32> to vector<1x8x8xbf16>
    %119 = vector.shape_cast %114 : vector<8x8xf32> to vector<1x8x8xf32>
    %120 = arith.truncf %119 : vector<1x8x8xf32> to vector<1x8x8xbf16>
    "tpu.trace_start"() <{level = 10 : i32, message = "bqd,bkd->bqk"}> : () -> ()
    %cst_71 = arith.constant dense<0.000000e+00> : vector<1x8x8xf32>
    %121 = tpu.matmul %116, %118, %cst_71 {dimension_numbers = #tpu.dot_dimension_numbers<[2], [2], [1], [1], [0, 0, 0, 1, 1, 1], [0], [0]>} : vector<1x8x8xbf16>, vector<1x8x8xbf16>, vector<1x8x8xf32> -> vector<1x8x8xf32>
    "tpu.trace_stop"() : () -> ()
    %cst_72 = arith.constant dense<0xFF800000> : vector<1x8xf32>
    %122 = vector.multi_reduction <maximumf>, %121, %cst_72 [2] : vector<1x8x8xf32> to vector<1x8xf32>
    %123 = vector.shape_cast %122 : vector<1x8xf32> to vector<1x8x1xf32>
    %124 = vector.broadcast %123 : vector<1x8x1xf32> to vector<1x8x8xf32>
    %125 = arith.subf %121, %124 : vector<1x8x8xf32>
    %126 = math.exp %125 : vector<1x8x8xf32>
    %cst_73 = arith.constant dense<0.000000e+00> : vector<1x8xf32>
    %127 = vector.multi_reduction <add>, %126, %cst_73 [2] : vector<1x8x8xf32> to vector<1x8xf32>
    %128 = vector.shape_cast %127 : vector<1x8xf32> to vector<1x8x1xf32>
    %129 = tpu.reciprocal %128 {approx = true} : vector<1x8x1xf32> -> vector<1x8x1xf32>
    %130 = vector.broadcast %129 : vector<1x8x1xf32> to vector<1x8x8xf32>
    %131 = arith.mulf %126, %130 : vector<1x8x8xf32>
    %132 = arith.truncf %131 : vector<1x8x8xf32> to vector<1x8x8xbf16>
    "tpu.trace_start"() <{level = 10 : i32, message = "bqk,bkd->bqd"}> : () -> ()
    %cst_74 = arith.constant dense<0.000000e+00> : vector<1x8x8xf32>
    %133 = tpu.matmul %132, %120, %cst_74 {dimension_numbers = #tpu.dot_dimension_numbers<[2], [1], [1], [2], [0, 0, 0, 1, 1, 2], [0], [0]>} : vector<1x8x8xbf16>, vector<1x8x8xbf16>, vector<1x8x8xf32> -> vector<1x8x8xf32>
    "tpu.trace_stop"() : () -> ()
    %134 = vector.shape_cast %133 : vector<1x8x8xf32> to vector<8x8xf32>
    %135 = arith.truncf %134 : vector<8x8xf32> to vector<8x8xbf16>
    %c3_75 = arith.constant 3 : index
    %c0_76 = arith.constant 0 : index
    %c0_77 = arith.constant 0 : index
    %136 = vector.load %arg5[%c3_75, %c0_76, %c0_77] : memref<6x8x48xbf16, #tpu.memory_space<vmem>>, vector<1x8x48xbf16>
    %137 = vector.shape_cast %136 : vector<1x8x48xbf16> to vector<8x48xbf16>
    %cst_78 = arith.constant dense<0.000000e+00> : vector<8x48xf32>
    %138 = tpu.matmul %135, %137, %cst_78 {dimension_numbers = #tpu.dot_dimension_numbers<[1], [0], [0], [1], [0, 0, 1, 1], [], []>} : vector<8x8xbf16>, vector<8x48xbf16>, vector<8x48xf32> -> vector<8x48xf32>
    %139 = arith.addf %105, %138 : vector<8x48xf32>
    %c4 = arith.constant 4 : index
    %c0_79 = arith.constant 0 : index
    %c0_80 = arith.constant 0 : index
    %140 = vector.load %arg2[%c4, %c0_79, %c0_80] : memref<6x48x8xbf16, #tpu.memory_space<vmem>>, vector<1x48x8xbf16>
    %141 = vector.shape_cast %140 : vector<1x48x8xbf16> to vector<48x8xbf16>
    %c4_81 = arith.constant 4 : index
    %c0_82 = arith.constant 0 : index
    %c0_83 = arith.constant 0 : index
    %142 = vector.load %arg3[%c4_81, %c0_82, %c0_83] : memref<6x48x8xbf16, #tpu.memory_space<vmem>>, vector<1x48x8xbf16>
    %143 = vector.shape_cast %142 : vector<1x48x8xbf16> to vector<48x8xbf16>
    %c4_84 = arith.constant 4 : index
    %c0_85 = arith.constant 0 : index
    %c0_86 = arith.constant 0 : index
    %144 = vector.load %arg4[%c4_84, %c0_85, %c0_86] : memref<6x48x8xbf16, #tpu.memory_space<vmem>>, vector<1x48x8xbf16>
    %145 = vector.shape_cast %144 : vector<1x48x8xbf16> to vector<48x8xbf16>
    %cst_87 = arith.constant dense<0.000000e+00> : vector<8x8xf32>
    %146 = tpu.matmul %2, %141, %cst_87 {dimension_numbers = #tpu.dot_dimension_numbers<[1], [0], [0], [1], [0, 0, 1, 1], [], []>} : vector<8x48xbf16>, vector<48x8xbf16>, vector<8x8xf32> -> vector<8x8xf32>
    %cst_88 = arith.constant dense<0.000000e+00> : vector<8x8xf32>
    %147 = tpu.matmul %2, %143, %cst_88 {dimension_numbers = #tpu.dot_dimension_numbers<[1], [0], [0], [1], [0, 0, 1, 1], [], []>} : vector<8x48xbf16>, vector<48x8xbf16>, vector<8x8xf32> -> vector<8x8xf32>
    %cst_89 = arith.constant dense<0.000000e+00> : vector<8x8xf32>
    %148 = tpu.matmul %2, %145, %cst_89 {dimension_numbers = #tpu.dot_dimension_numbers<[1], [0], [0], [1], [0, 0, 1, 1], [], []>} : vector<8x48xbf16>, vector<48x8xbf16>, vector<8x8xf32> -> vector<8x8xf32>
    %149 = vector.shape_cast %146 : vector<8x8xf32> to vector<1x8x8xf32>
    %150 = arith.truncf %149 : vector<1x8x8xf32> to vector<1x8x8xbf16>
    %151 = vector.shape_cast %147 : vector<8x8xf32> to vector<1x8x8xf32>
    %152 = arith.truncf %151 : vector<1x8x8xf32> to vector<1x8x8xbf16>
    %153 = vector.shape_cast %148 : vector<8x8xf32> to vector<1x8x8xf32>
    %154 = arith.truncf %153 : vector<1x8x8xf32> to vector<1x8x8xbf16>
    "tpu.trace_start"() <{level = 10 : i32, message = "bqd,bkd->bqk"}> : () -> ()
    %cst_90 = arith.constant dense<0.000000e+00> : vector<1x8x8xf32>
    %155 = tpu.matmul %150, %152, %cst_90 {dimension_numbers = #tpu.dot_dimension_numbers<[2], [2], [1], [1], [0, 0, 0, 1, 1, 1], [0], [0]>} : vector<1x8x8xbf16>, vector<1x8x8xbf16>, vector<1x8x8xf32> -> vector<1x8x8xf32>
    "tpu.trace_stop"() : () -> ()
    %cst_91 = arith.constant dense<0xFF800000> : vector<1x8xf32>
    %156 = vector.multi_reduction <maximumf>, %155, %cst_91 [2] : vector<1x8x8xf32> to vector<1x8xf32>
    %157 = vector.shape_cast %156 : vector<1x8xf32> to vector<1x8x1xf32>
    %158 = vector.broadcast %157 : vector<1x8x1xf32> to vector<1x8x8xf32>
    %159 = arith.subf %155, %158 : vector<1x8x8xf32>
    %160 = math.exp %159 : vector<1x8x8xf32>
    %cst_92 = arith.constant dense<0.000000e+00> : vector<1x8xf32>
    %161 = vector.multi_reduction <add>, %160, %cst_92 [2] : vector<1x8x8xf32> to vector<1x8xf32>
    %162 = vector.shape_cast %161 : vector<1x8xf32> to vector<1x8x1xf32>
    %163 = tpu.reciprocal %162 {approx = true} : vector<1x8x1xf32> -> vector<1x8x1xf32>
    %164 = vector.broadcast %163 : vector<1x8x1xf32> to vector<1x8x8xf32>
    %165 = arith.mulf %160, %164 : vector<1x8x8xf32>
    %166 = arith.truncf %165 : vector<1x8x8xf32> to vector<1x8x8xbf16>
    "tpu.trace_start"() <{level = 10 : i32, message = "bqk,bkd->bqd"}> : () -> ()
    %cst_93 = arith.constant dense<0.000000e+00> : vector<1x8x8xf32>
    %167 = tpu.matmul %166, %154, %cst_93 {dimension_numbers = #tpu.dot_dimension_numbers<[2], [1], [1], [2], [0, 0, 0, 1, 1, 2], [0], [0]>} : vector<1x8x8xbf16>, vector<1x8x8xbf16>, vector<1x8x8xf32> -> vector<1x8x8xf32>
    "tpu.trace_stop"() : () -> ()
    %168 = vector.shape_cast %167 : vector<1x8x8xf32> to vector<8x8xf32>
    %169 = arith.truncf %168 : vector<8x8xf32> to vector<8x8xbf16>
    %c4_94 = arith.constant 4 : index
    %c0_95 = arith.constant 0 : index
    %c0_96 = arith.constant 0 : index
    %170 = vector.load %arg5[%c4_94, %c0_95, %c0_96] : memref<6x8x48xbf16, #tpu.memory_space<vmem>>, vector<1x8x48xbf16>
    %171 = vector.shape_cast %170 : vector<1x8x48xbf16> to vector<8x48xbf16>
    %cst_97 = arith.constant dense<0.000000e+00> : vector<8x48xf32>
    %172 = tpu.matmul %169, %171, %cst_97 {dimension_numbers = #tpu.dot_dimension_numbers<[1], [0], [0], [1], [0, 0, 1, 1], [], []>} : vector<8x8xbf16>, vector<8x48xbf16>, vector<8x48xf32> -> vector<8x48xf32>
    %173 = arith.addf %139, %172 : vector<8x48xf32>
    %c5 = arith.constant 5 : index
    %c0_98 = arith.constant 0 : index
    %c0_99 = arith.constant 0 : index
    %174 = vector.load %arg2[%c5, %c0_98, %c0_99] : memref<6x48x8xbf16, #tpu.memory_space<vmem>>, vector<1x48x8xbf16>
    %175 = vector.shape_cast %174 : vector<1x48x8xbf16> to vector<48x8xbf16>
    %c5_100 = arith.constant 5 : index
    %c0_101 = arith.constant 0 : index
    %c0_102 = arith.constant 0 : index
    %176 = vector.load %arg3[%c5_100, %c0_101, %c0_102] : memref<6x48x8xbf16, #tpu.memory_space<vmem>>, vector<1x48x8xbf16>
    %177 = vector.shape_cast %176 : vector<1x48x8xbf16> to vector<48x8xbf16>
    %c5_103 = arith.constant 5 : index
    %c0_104 = arith.constant 0 : index
    %c0_105 = arith.constant 0 : index
    %178 = vector.load %arg4[%c5_103, %c0_104, %c0_105] : memref<6x48x8xbf16, #tpu.memory_space<vmem>>, vector<1x48x8xbf16>
    %179 = vector.shape_cast %178 : vector<1x48x8xbf16> to vector<48x8xbf16>
    %cst_106 = arith.constant dense<0.000000e+00> : vector<8x8xf32>
    %180 = tpu.matmul %2, %175, %cst_106 {dimension_numbers = #tpu.dot_dimension_numbers<[1], [0], [0], [1], [0, 0, 1, 1], [], []>} : vector<8x48xbf16>, vector<48x8xbf16>, vector<8x8xf32> -> vector<8x8xf32>
    %cst_107 = arith.constant dense<0.000000e+00> : vector<8x8xf32>
    %181 = tpu.matmul %2, %177, %cst_107 {dimension_numbers = #tpu.dot_dimension_numbers<[1], [0], [0], [1], [0, 0, 1, 1], [], []>} : vector<8x48xbf16>, vector<48x8xbf16>, vector<8x8xf32> -> vector<8x8xf32>
    %cst_108 = arith.constant dense<0.000000e+00> : vector<8x8xf32>
    %182 = tpu.matmul %2, %179, %cst_108 {dimension_numbers = #tpu.dot_dimension_numbers<[1], [0], [0], [1], [0, 0, 1, 1], [], []>} : vector<8x48xbf16>, vector<48x8xbf16>, vector<8x8xf32> -> vector<8x8xf32>
    %183 = vector.shape_cast %180 : vector<8x8xf32> to vector<1x8x8xf32>
    %184 = arith.truncf %183 : vector<1x8x8xf32> to vector<1x8x8xbf16>
    %185 = vector.shape_cast %181 : vector<8x8xf32> to vector<1x8x8xf32>
    %186 = arith.truncf %185 : vector<1x8x8xf32> to vector<1x8x8xbf16>
    %187 = vector.shape_cast %182 : vector<8x8xf32> to vector<1x8x8xf32>
    %188 = arith.truncf %187 : vector<1x8x8xf32> to vector<1x8x8xbf16>
    "tpu.trace_start"() <{level = 10 : i32, message = "bqd,bkd->bqk"}> : () -> ()
    %cst_109 = arith.constant dense<0.000000e+00> : vector<1x8x8xf32>
    %189 = tpu.matmul %184, %186, %cst_109 {dimension_numbers = #tpu.dot_dimension_numbers<[2], [2], [1], [1], [0, 0, 0, 1, 1, 1], [0], [0]>} : vector<1x8x8xbf16>, vector<1x8x8xbf16>, vector<1x8x8xf32> -> vector<1x8x8xf32>
    "tpu.trace_stop"() : () -> ()
    %cst_110 = arith.constant dense<0xFF800000> : vector<1x8xf32>
    %190 = vector.multi_reduction <maximumf>, %189, %cst_110 [2] : vector<1x8x8xf32> to vector<1x8xf32>
    %191 = vector.shape_cast %190 : vector<1x8xf32> to vector<1x8x1xf32>
    %192 = vector.broadcast %191 : vector<1x8x1xf32> to vector<1x8x8xf32>
    %193 = arith.subf %189, %192 : vector<1x8x8xf32>
    %194 = math.exp %193 : vector<1x8x8xf32>
    %cst_111 = arith.constant dense<0.000000e+00> : vector<1x8xf32>
    %195 = vector.multi_reduction <add>, %194, %cst_111 [2] : vector<1x8x8xf32> to vector<1x8xf32>
    %196 = vector.shape_cast %195 : vector<1x8xf32> to vector<1x8x1xf32>
    %197 = tpu.reciprocal %196 {approx = true} : vector<1x8x1xf32> -> vector<1x8x1xf32>
    %198 = vector.broadcast %197 : vector<1x8x1xf32> to vector<1x8x8xf32>
    %199 = arith.mulf %194, %198 : vector<1x8x8xf32>
    %200 = arith.truncf %199 : vector<1x8x8xf32> to vector<1x8x8xbf16>
    "tpu.trace_start"() <{level = 10 : i32, message = "bqk,bkd->bqd"}> : () -> ()
    %cst_112 = arith.constant dense<0.000000e+00> : vector<1x8x8xf32>
    %201 = tpu.matmul %200, %188, %cst_112 {dimension_numbers = #tpu.dot_dimension_numbers<[2], [1], [1], [2], [0, 0, 0, 1, 1, 2], [0], [0]>} : vector<1x8x8xbf16>, vector<1x8x8xbf16>, vector<1x8x8xf32> -> vector<1x8x8xf32>
    "tpu.trace_stop"() : () -> ()
    %202 = vector.shape_cast %201 : vector<1x8x8xf32> to vector<8x8xf32>
    %203 = arith.truncf %202 : vector<8x8xf32> to vector<8x8xbf16>
    %c5_113 = arith.constant 5 : index
    %c0_114 = arith.constant 0 : index
    %c0_115 = arith.constant 0 : index
    %204 = vector.load %arg5[%c5_113, %c0_114, %c0_115] : memref<6x8x48xbf16, #tpu.memory_space<vmem>>, vector<1x8x48xbf16>
    %205 = vector.shape_cast %204 : vector<1x8x48xbf16> to vector<8x48xbf16>
    %cst_116 = arith.constant dense<0.000000e+00> : vector<8x48xf32>
    %206 = tpu.matmul %203, %205, %cst_116 {dimension_numbers = #tpu.dot_dimension_numbers<[1], [0], [0], [1], [0, 0, 1, 1], [], []>} : vector<8x8xbf16>, vector<8x48xbf16>, vector<8x48xf32> -> vector<8x48xf32>
    %207 = arith.addf %173, %206 : vector<8x48xf32>
    %c0_117 = arith.constant 0 : index
    %c0_118 = arith.constant 0 : index
    %208 = vector.load %arg6[%c0_117, %c0_118] : memref<1x48xf32, #tpu.memory_space<vmem>>, vector<1x48xf32>
    %209 = vector.broadcast %208 : vector<1x48xf32> to vector<8x48xf32>
    %210 = arith.addf %207, %209 : vector<8x48xf32>
    %211 = vector.shape_cast %210 : vector<8x48xf32> to vector<1x8x48xf32>
    %c0_119 = arith.constant 0 : index
    %c0_120 = arith.constant 0 : index
    %c0_121 = arith.constant 0 : index
    %212 = vector.load %arg7[%c0_119, %c0_120, %c0_121] : memref<1x8x48xf32, #tpu.memory_space<vmem>>, vector<1x8x48xf32>
    tpu.vector_store %arg7[%c0_119, %c0_120, %c0_121], %211 {strides = array<i32>} : memref<1x8x48xf32, #tpu.memory_space<vmem>>, vector<1x8x48xf32>,
    return
  }
  func.func @transform_0(%arg0: i32) -> (i32, i32, i32) {
    %c0_i32 = arith.constant 0 : i32
    %c0_i32_0 = arith.constant 0 : i32
    %c0_i32_1 = arith.constant 0 : i32
    return %arg0, %c0_i32, %c0_i32_0 : i32, i32, i32
  }
  func.func @transform_1(%arg0: i32) -> (i32, i32, i32) {
    %c0_i32 = arith.constant 0 : i32
    %c0_i32_0 = arith.constant 0 : i32
    %c0_i32_1 = arith.constant 0 : i32
    %c0_i32_2 = arith.constant 0 : i32
    return %c0_i32, %c0_i32_0, %c0_i32_1 : i32, i32, i32
  }
  func.func @transform_2(%arg0: i32) -> (i32, i32, i32) {
    %c0_i32 = arith.constant 0 : i32
    %c0_i32_0 = arith.constant 0 : i32
    %c0_i32_1 = arith.constant 0 : i32
    %c0_i32_2 = arith.constant 0 : i32
    return %c0_i32, %c0_i32_0, %c0_i32_1 : i32, i32, i32
  }
  func.func @transform_3(%arg0: i32) -> (i32, i32, i32) {
    %c0_i32 = arith.constant 0 : i32
    %c0_i32_0 = arith.constant 0 : i32
    %c0_i32_1 = arith.constant 0 : i32
    %c0_i32_2 = arith.constant 0 : i32
    return %c0_i32, %c0_i32_0, %c0_i32_1 : i32, i32, i32
  }
  func.func @transform_4(%arg0: i32) -> (i32, i32, i32) {
    %c0_i32 = arith.constant 0 : i32
    %c0_i32_0 = arith.constant 0 : i32
    %c0_i32_1 = arith.constant 0 : i32
    %c0_i32_2 = arith.constant 0 : i32
    return %c0_i32, %c0_i32_0, %c0_i32_1 : i32, i32, i32
  }
  func.func @transform_5(%arg0: i32) -> (i32, i32) {
    %c0_i32 = arith.constant 0 : i32
    %c0_i32_0 = arith.constant 0 : i32
    %c0_i32_1 = arith.constant 0 : i32
    return %c0_i32, %c0_i32_0 : i32, i32
  }
  func.func @transform_6(%arg0: i32) -> (i32, i32, i32) {
    %c0_i32 = arith.constant 0 : i32
    %c0_i32_0 = arith.constant 0 : i32
    %c0_i32_1 = arith.constant 0 : i32
    return %arg0, %c0_i32, %c0_i32_0 : i32, i32, i32
  }
}

</mosaic_0001>

<llo_original>
// kernel: tpu_custom_call.1
$region0: #{tpu_custom_call.1}
  #allocation0 [shape = 'u32[]', space=smem, size = 0x4, offset = 0x4, fixed_abs, tag = 'smem constant byte address 0x4 - core index']
  #allocation1 [shape = 'u32[144,128]{1,0:T(1,128)}', space=vmem, size = 0x12000, scoped, tag = 'internal scratch']
  %s0 = inlined_call_operand.vmem [shape: f32[2,8,48], index: 0, kind: input, shape index: {}]
  %s1 = inlined_call_operand.vmem [shape: bf16[6,48,8], index: 1, kind: input, shape index: {}]
  %s2 = inlined_call_operand.vmem [shape: bf16[6,48,8], index: 2, kind: input, shape index: {}]
  %s3 = inlined_call_operand.vmem [shape: bf16[6,48,8], index: 3, kind: input, shape index: {}]
  %s4 = inlined_call_operand.vmem [shape: bf16[6,8,48], index: 4, kind: input, shape index: {}]
  %s5 = inlined_call_operand.vmem [shape: f32[1,48], index: 5, kind: input, shape index: {}]
  %s6 = inlined_call_operand.hbm [shape: f32[2,8,48], index: 6, kind: output, shape index: {}]
  %s7 = sld [smem:[#allocation0]]
  $region57: #{tpu_custom_call.1} parent=0
    _
  %s9 = ssub.s32 1, %s7
  %s10 = scalar_select 0, %s9, %s7
  $region1: #{tpu_custom_call.1} parent=0
    #allocation2 [shape = 'u8[8192]{0}', space=vmem, size = 0x2000, scoped, tag = 'output window, operand 0']
    #allocation3 [shape = 's32[2]{0}', space=sflag, size = 0x8, scoped, tag = 'scoped memory for tpu_custom_call.1']
    %11 = vsyncpa [#allocation3], 0
    %s12 = scalar_lea.sflag [#allocation3], 1
    %13 = vsyncpa %s12, 0
    loop: start=0, step=1, limit=4
    $region2: #{tpu_custom_call.1} parent=1 // loop_pre_header
      _
    $region3: #{tpu_custom_call.1} parent=1 // loop_header
      %s15 = sphi 0, %s19
      %p16 = scmp.ge.s32.totalorder %s15, 4
      %s25 = sphi 0, %s27
      %s28 = sphi 0, %s25
      %s29 = sphi 0, %s28
      %s45 = sphi 0, %s29
      %s49 = sphi 0, %s49
      %s51 = sphi 0, %s49
      %s52 = sphi 0, %s51
      %s66 = sphi 0, %s52
      %s70 = sphi 0, %s70
      %s72 = sphi 0, %s70
      %s73 = sphi 0, %s72
      %s87 = sphi 0, %s73
      %s91 = sphi 0, %s91
      %s93 = sphi 0, %s91
      %s94 = sphi 0, %s93
      %s108 = sphi 0, %s94
      %s112 = sphi 0, %s112
      %s114 = sphi 0, %s112
      %s115 = sphi 0, %s114
      %s129 = sphi 0, %s115
      %s133 = sphi 0, %s133
      %s135 = sphi 0, %s133
      %s136 = sphi 0, %s135
      %s150 = sphi 0, %s136
      %s156 = sphi 0, %s158
      %s159 = sphi 0, %s156
      %s160 = sphi 0, %s159
      %s176 = sphi 0, %s160
    $region4: #{tpu_custom_call.1} parent=1 // loop_header_branch
      %18 = sbr.rel (%p16) target = $region8
    $region5: #{tpu_custom_call.1} parent=1 // loop_body
      %s20 = ssub.s32 %s15, 1
      %s21 = ssub.s32 %s15, 2
      %s22 = sadd.s32 %s15, 1
      %s23 = ssub.s32 %s15, %s22
      %p24 = scmp.eq.s32.totalorder %s23, 0
      %s26 = sadd.s32 %s25, 1
      %s27 = scalar_select %p24, %s25, %s26
      %p30 = pneg %p24
      %p31 = scmp.eq.s32.totalorder %s15, 1
      %p32 = por %p30, %p31
      %p33 = scmp.ne.s32.totalorder %s25, %s28
      %p34 = scmp.eq.s32.totalorder %s15, 0
      %p35 = por %p33, %p34
      %p36 = scmp.ne.s32.totalorder %s25, %s28
      %p37 = scmp.eq.s32.totalorder %s20, 1
      %p38 = por %p36, %p37
      %p39 = scmp.ne.s32.totalorder %s28, %s29
      %p40 = scmp.eq.s32.totalorder %s20, 0
      %p41 = por %p39, %p40
      %p42 = scmp.ne.s32.totalorder %s28, %s29
      %p43 = scmp.eq.s32.totalorder %s21, 1
      %p44 = por %p42, %p43
      %p46 = scmp.ne.s32.totalorder %s29, %s45
      %p47 = scmp.eq.s32.totalorder %s21, 0
      %p48 = por %p46, %p47
      %s50 = sadd.s32 %s49, 1
      %p53 = scmp.eq.s32.totalorder %s15, 1
      %p54 = scmp.ne.s32.totalorder %s49, %s51
      %p55 = scmp.eq.s32.totalorder %s15, 0
      %p56 = por %p54, %p55
      %p57 = scmp.ne.s32.totalorder %s49, %s51
      %p58 = scmp.eq.s32.totalorder %s20, 1
      %p59 = por %p57, %p58
      %p60 = scmp.ne.s32.totalorder %s51, %s52
      %p61 = scmp.eq.s32.totalorder %s20, 0
      %p62 = por %p60, %p61
      %p63 = scmp.ne.s32.totalorder %s51, %s52
      %p64 = scmp.eq.s32.totalorder %s21, 1
      %p65 = por %p63, %p64
      %p67 = scmp.ne.s32.totalorder %s52, %s66
      %p68 = scmp.eq.s32.totalorder %s21, 0
      %p69 = por %p67, %p68
      %s71 = sadd.s32 %s70, 1
      %p74 = scmp.eq.s32.totalorder %s15, 1
      %p75 = scmp.ne.s32.totalorder %s70, %s72
      %p76 = scmp.eq.s32.totalorder %s15, 0
      %p77 = por %p75, %p76
      %p78 = scmp.ne.s32.totalorder %s70, %s72
      %p79 = scmp.eq.s32.totalorder %s20, 1
      %p80 = por %p78, %p79
      %p81 = scmp.ne.s32.totalorder %s72, %s73
      %p82 = scmp.eq.s32.totalorder %s20, 0
      %p83 = por %p81, %p82
      %p84 = scmp.ne.s32.totalorder %s72, %s73
      %p85 = scmp.eq.s32.totalorder %s21, 1
      %p86 = por %p84, %p85
      %p88 = scmp.ne.s32.totalorder %s73, %s87
      %p89 = scmp.eq.s32.totalorder %s21, 0
      %p90 = por %p88, %p89
      %s92 = sadd.s32 %s91, 1
      %p95 = scmp.eq.s32.totalorder %s15, 1
      %p96 = scmp.ne.s32.totalorder %s91, %s93
      %p97 = scmp.eq.s32.totalorder %s15, 0
      %p98 = por %p96, %p97
      %p99 = scmp.ne.s32.totalorder %s91, %s93
      %p100 = scmp.eq.s32.totalorder %s20, 1
      %p101 = por %p99, %p100
      %p102 = scmp.ne.s32.totalorder %s93, %s94
      %p103 = scmp.eq.s32.totalorder %s20, 0
      %p104 = por %p102, %p103
      %p105 = scmp.ne.s32.totalorder %s93, %s94
      %p106 = scmp.eq.s32.totalorder %s21, 1
      %p107 = por %p105, %p106
      %p109 = scmp.ne.s32.totalorder %s94, %s108
      %p110 = scmp.eq.s32.totalorder %s21, 0
      %p111 = por %p109, %p110
      %s113 = sadd.s32 %s112, 1
      %p116 = scmp.eq.s32.totalorder %s15, 1
      %p117 = scmp.ne.s32.totalorder %s112, %s114
      %p118 = scmp.eq.s32.totalorder %s15, 0
      %p119 = por %p117, %p118
      %p120 = scmp.ne.s32.totalorder %s112, %s114
      %p121 = scmp.eq.s32.totalorder %s20, 1
      %p122 = por %p120, %p121
      %p123 = scmp.ne.s32.totalorder %s114, %s115
      %p124 = scmp.eq.s32.totalorder %s20, 0
      %p125 = por %p123, %p124
      %p126 = scmp.ne.s32.totalorder %s114, %s115
      %p127 = scmp.eq.s32.totalorder %s21, 1
      %p128 = por %p126, %p127
      %p130 = scmp.ne.s32.totalorder %s115, %s129
      %p131 = scmp.eq.s32.totalorder %s21, 0
      %p132 = por %p130, %p131
      %s134 = sadd.s32 %s133, 1
      %p137 = scmp.eq.s32.totalorder %s15, 1
      %p138 = scmp.ne.s32.totalorder %s133, %s135
      %p139 = scmp.eq.s32.totalorder %s15, 0
      %p140 = por %p138, %p139
      %p141 = scmp.ne.s32.totalorder %s133, %s135
      %p142 = scmp.eq.s32.totalorder %s20, 1
      %p143 = por %p141, %p142
      %p144 = scmp.ne.s32.totalorder %s135, %s136
      %p145 = scmp.eq.s32.totalorder %s20, 0
      %p146 = por %p144, %p145
      %p147 = scmp.ne.s32.totalorder %s135, %s136
      %p148 = scmp.eq.s32.totalorder %s21, 1
      %p149 = por %p147, %p148
      %p151 = scmp.ne.s32.totalorder %s136, %s150
      %p152 = scmp.eq.s32.totalorder %s21, 0
      %p153 = por %p151, %p152
      %s154 = ssub.s32 %s15, %s22
      %p155 = scmp.eq.s32.totalorder %s154, 0
      %s157 = sadd.s32 %s156, 1
      %s158 = scalar_select %p155, %s156, %s157
      %p161 = pneg %p155
      %p162 = scmp.eq.s32.totalorder %s15, 1
      %p163 = por %p161, %p162
      %p164 = scmp.ne.s32.totalorder %s156, %s159
      %p165 = scmp.eq.s32.totalorder %s15, 0
      %p166 = por %p164, %p165
      %p167 = scmp.ne.s32.totalorder %s156, %s159
      %p168 = scmp.eq.s32.totalorder %s20, 1
      %p169 = por %p167, %p168
      %p170 = scmp.ne.s32.totalorder %s159, %s160
      %p171 = scmp.eq.s32.totalorder %s20, 0
      %p172 = por %p170, %p171
      %p173 = scmp.ne.s32.totalorder %s159, %s160
      %p174 = scmp.eq.s32.totalorder %s21, 1
      %p175 = por %p173, %p174
      %p177 = scmp.ne.s32.totalorder %s160, %s176
      %p178 = scmp.eq.s32.totalorder %s21, 0
      %p179 = por %p177, %p178
      %p180 = scmp.le.s32.totalorder 1, %s15
      %p181 = scmp.lt.s32.totalorder %s15, 3
      %p182 = pnand %p180, %p181
      %p183 = pneg %p182
      // Predicated region
      $region9: #{tpu_custom_call.1} parent=5 // pred_check
        _
      $region10: #{tpu_custom_call.1} parent=5 // pred_check_branch
        %185 = sbr.rel (%p182) target = $region12
      $region11: #{tpu_custom_call.1} parent=5 // pred_region
        %s186 = ssub.s32 %s15, 1
        // Predicated region
        $region13: #{tpu_custom_call.1} parent=11 // pred_check
          %p187 = pneg %p62
        $region14: #{tpu_custom_call.1} parent=11 // pred_check_branch
          %189 = sbr.rel (%p187) target = $region16
        $region15: #{tpu_custom_call.1} parent=11 // pred_region
          _
        $region16: #{tpu_custom_call.1} parent=11 // pred_fallthru
          _
        // Predicated region
        $region17: #{tpu_custom_call.1} parent=11 // pred_check
          %p190 = pneg %p83
        $region18: #{tpu_custom_call.1} parent=11 // pred_check_branch
          %192 = sbr.rel (%p190) target = $region20
        $region19: #{tpu_custom_call.1} parent=11 // pred_region
          _
        $region20: #{tpu_custom_call.1} parent=11 // pred_fallthru
          _
        // Predicated region
        $region21: #{tpu_custom_call.1} parent=11 // pred_check
          %p193 = pneg %p104
        $region22: #{tpu_custom_call.1} parent=11 // pred_check_branch
          %195 = sbr.rel (%p193) target = $region24
        $region23: #{tpu_custom_call.1} parent=11 // pred_region
          _
        $region24: #{tpu_custom_call.1} parent=11 // pred_fallthru
          _
        // Predicated region
        $region25: #{tpu_custom_call.1} parent=11 // pred_check
          %p196 = pneg %p125
        $region26: #{tpu_custom_call.1} parent=11 // pred_check_branch
          %198 = sbr.rel (%p196) target = $region28
        $region27: #{tpu_custom_call.1} parent=11 // pred_region
          _
        $region28: #{tpu_custom_call.1} parent=11 // pred_fallthru
          _
        // Predicated region
        $region29: #{tpu_custom_call.1} parent=11 // pred_check
          %p199 = pneg %p146
        $region30: #{tpu_custom_call.1} parent=11 // pred_check_branch
          %201 = sbr.rel (%p199) target = $region32
        $region31: #{tpu_custom_call.1} parent=11 // pred_region
          _
        $region32: #{tpu_custom_call.1} parent=11 // pred_fallthru
          _
      $region12: #{tpu_custom_call.1} parent=5 // pred_fallthru
        _
      %p202 = scmp.lt.s32.totalorder %s15, 2
      // Predicated region
      $region33: #{tpu_custom_call.1} parent=5 // pred_check
        %p203 = pneg %p202
      $region34: #{tpu_custom_call.1} parent=5 // pred_check_branch
        %205 = sbr.rel (%p203) target = $region36
      $region35: #{tpu_custom_call.1} parent=5 // pred_region
        // Predicated region
        $region37: #{tpu_custom_call.1} parent=35 // pred_check
          %p206 = pneg %p35
        $region38: #{tpu_custom_call.1} parent=35 // pred_check_branch
          %208 = sbr.rel (%p206) target = $region40
        $region39: #{tpu_custom_call.1} parent=35 // pred_region
          %p209 = scmp.lt.s32.totalorder %s15, 1
          %s210 = scalar_select %p209, %s15, 1
          %s211 = smul.addr %s210, 8
          %s212 = scalar_lea.vmem %s0, %s211
        $region40: #{tpu_custom_call.1} parent=35 // pred_fallthru
          _
      $region36: #{tpu_custom_call.1} parent=5 // pred_fallthru
        _
      %p213 = scmp.le.s32.totalorder 1, %s15
      %p214 = scmp.lt.s32.totalorder %s15, 3
      %p215 = pnand %p213, %p214
      %p216 = pneg %p215
      // Predicated region
      $region41: #{tpu_custom_call.1} parent=5 // pred_check
        _
      $region42: #{tpu_custom_call.1} parent=5 // pred_check_branch
        %218 = sbr.rel (%p215) target = $region44
      $region43: #{tpu_custom_call.1} parent=5 // pred_region
        %s219 = ssub.s32 %s15, 1
        %p220 = scmp.lt.s32.totalorder %s20, 1
        %s221 = scalar_select %p220, %s20, 1
        %s222 = smul.addr %s221, 8
        %s223 = scalar_lea.vmem %s0, %s222
        %p224 = pneg %p41
        %p225 = pneg %p38
        %p226 = pneg %p62
        %p227 = pneg %p59
        %p228 = pneg %p83
        %p229 = pneg %p80
        %p230 = pneg %p104
        %p231 = pneg %p101
        %p232 = pneg %p125
        %p233 = pneg %p122
        %p234 = pneg %p146
        %p235 = pneg %p143
        %p236 = pneg %p172
        %p237 = pneg %p169
        %s238 = sand.u32 %s159, 1
        %s239 = scalar_lea.sflag [#allocation3], %s238
        %s240 = sand.u32 %s159, 1
        %s241 = smul.addr %s240, 8
        %s242 = scalar_lea.vmem [#allocation2], %s241
        %p243 = scmp.lt.s32.totalorder %s20, 1
        %s244 = scalar_select %p243, %s20, 1
        %s245 = smul.addr %s244, 8
        %s246 = scalar_lea.vmem %s0, %s245
        %v248 = vld [vmem:[%s246] sm:$0xff]
        %v249 = vpack.c.bf16 %v248, %v248
        %v250 = vld [vmem:[%s1] sm:$0xf]
        %v251 = vld [vmem:[%s1 + $0x4] sm:$0xf]
        %v252 = vld [vmem:[%s1 + $0x8] sm:$0xf]
        %v253 = vld [vmem:[%s1 + $0xc] sm:$0xf]
        %v254 = vld [vmem:[%s1 + $0x10] sm:$0xf]
        %v255 = vld [vmem:[%s1 + $0x14] sm:$0xf]
        %v256 = vld [vmem:[%s2] sm:$0xf]
        %v257 = vld [vmem:[%s2 + $0x4] sm:$0xf]
        %v258 = vld [vmem:[%s2 + $0x8] sm:$0xf]
        %v259 = vld [vmem:[%s2 + $0xc] sm:$0xf]
        %v260 = vld [vmem:[%s2 + $0x10] sm:$0xf]
        %v261 = vld [vmem:[%s2 + $0x14] sm:$0xf]
        %v262 = vld [vmem:[%s3] sm:$0xf]
        %v263 = vld [vmem:[%s3 + $0x4] sm:$0xf]
        %v264 = vld [vmem:[%s3 + $0x8] sm:$0xf]
        %v265 = vld [vmem:[%s3 + $0xc] sm:$0xf]
        %v266 = vld [vmem:[%s3 + $0x10] sm:$0xf]
        %v267 = vld [vmem:[%s3 + $0x14] sm:$0xf]
        %v274 = vunpack.c.l.b16 %v250
        %v275 = vunpack.c.l.b16 %v251
        %v276 = vunpack.c.l.b16 %v252
        %v277 = vunpack.c.l.b16 %v253
        %v278 = vunpack.c.l.b16 %v254
        %v279 = vunpack.c.l.b16 %v255
        %v280 = vpack.c.b16 %v275, %v274
        %v281 = vpack.c.b16 %v277, %v276
        %v282 = vpack.c.b16 %v279, %v278
        %vm286 = vcmask 392192
        %v288 = vsel %vm286, %v249, 0
        %290 = vmatprep.subr.bf16.mxu0 0
        %291 = vmatpush1.bf16.msra.mxu0 %v280
        %292 = vmatprep.subr.bf16.mxu0 0
        %293 = vmatpush1.bf16.msra.mxu0 %v281
        %294 = vmatprep.subr.bf16.mxu0 0
        %295 = vmatpush1.bf16.msra.mxu0 %v282
        %296 = vmatprep.subr.bf16.mxu0 0
        %297 = vmatpush1.bf16.msra.mxu0 0
        %298 = vmatprep.subr.bf16.mxu0 0
        %299 = vmatpush1.bf16.msra.mxu0 0
        %300 = vmatprep.subr.bf16.mxu0 0
        %301 = vmatpush1.bf16.msra.mxu0 0
        %302 = vmatprep.subr.bf16.mxu0 0
        %303 = vmatpush1.bf16.msra.mxu0 0
        %304 = vmatprep.subr.bf16.mxu0 0
        %305 = vmatpush1.bf16.msra.mxu0 0
        %306 = vmatprep.subr.bf16.mxu0 0
        %307 = vmatpush1.bf16.msra.mxu0 0
        %308 = vmatprep.subr.bf16.mxu0 0
        %309 = vmatpush1.bf16.msra.mxu0 0
        %310 = vmatprep.subr.bf16.mxu0 0
        %311 = vmatpush1.bf16.msra.mxu0 0
        %312 = vmatprep.subr.bf16.mxu0 0
        %313 = vmatpush1.bf16.msra.mxu0 0
        %314 = vmatprep.subr.bf16.mxu0 0
        %315 = vmatpush1.bf16.msra.mxu0 0
        %316 = vmatprep.subr.bf16.mxu0 0
        %317 = vmatpush1.bf16.msra.mxu0 0
        %318 = vmatprep.subr.bf16.mxu0 0
        %319 = vmatpush1.bf16.msra.mxu0 0
        %320 = vmatprep.subr.bf16.mxu0 0
        %321 = vmatpush1.bf16.msra.mxu0 0
        %322 = vmatprep.mubr.bf16.mxu0 0
        %323 = vmatmul.mubr.bf16.gmra.mrb[0].mxu0 %v288
        %v324 = vpop.f32.mrb[0].mxu0
        %v325 = vadd.f32 0.0, %v324
        %v326 = vpop.f32.mrb[0].mxu0
        %v327 = vpop.f32.mrb[0].mxu0
        %v328 = vpop.f32.mrb[0].mxu0
        %329 = vdwg.mxu0
        %v336 = vunpack.c.l.b16 %v256
        %v337 = vunpack.c.l.b16 %v257
        %v338 = vunpack.c.l.b16 %v258
        %v339 = vunpack.c.l.b16 %v259
        %v340 = vunpack.c.l.b16 %v260
        %v341 = vunpack.c.l.b16 %v261
        %v342 = vpack.c.b16 %v337, %v336
        %v343 = vpack.c.b16 %v339, %v338
        %v344 = vpack.c.b16 %v341, %v340
        %348 = vmatprep.subr.bf16.mxu0 0
        %349 = vmatpush1.bf16.msra.mxu0 %v342
        %350 = vmatprep.subr.bf16.mxu0 0
        %351 = vmatpush1.bf16.msra.mxu0 %v343
        %352 = vmatprep.subr.bf16.mxu0 0
        %353 = vmatpush1.bf16.msra.mxu0 %v344
        %354 = vmatprep.subr.bf16.mxu0 0
        %355 = vmatpush1.bf16.msra.mxu0 0
        %356 = vmatprep.subr.bf16.mxu0 0
        %357 = vmatpush1.bf16.msra.mxu0 0
        %358 = vmatprep.subr.bf16.mxu0 0
        %359 = vmatpush1.bf16.msra.mxu0 0
        %360 = vmatprep.subr.bf16.mxu0 0
        %361 = vmatpush1.bf16.msra.mxu0 0
        %362 = vmatprep.subr.bf16.mxu0 0
        %363 = vmatpush1.bf16.msra.mxu0 0
        %364 = vmatprep.subr.bf16.mxu0 0
        %365 = vmatpush1.bf16.msra.mxu0 0
        %366 = vmatprep.subr.bf16.mxu0 0
        %367 = vmatpush1.bf16.msra.mxu0 0
        %368 = vmatprep.subr.bf16.mxu0 0
        %369 = vmatpush1.bf16.msra.mxu0 0
        %370 = vmatprep.subr.bf16.mxu0 0
        %371 = vmatpush1.bf16.msra.mxu0 0
        %372 = vmatprep.subr.bf16.mxu0 0
        %373 = vmatpush1.bf16.msra.mxu0 0
        %374 = vmatprep.subr.bf16.mxu0 0
        %375 = vmatpush1.bf16.msra.mxu0 0
        %376 = vmatprep.subr.bf16.mxu0 0
        %377 = vmatpush1.bf16.msra.mxu0 0
        %378 = vmatprep.subr.bf16.mxu0 0
        %379 = vmatpush1.bf16.msra.mxu0 0
        %380 = vmatprep.mubr.bf16.mxu0 0
        %381 = vmatmul.mubr.bf16.gmra.mrb[0].mxu0 %v288
        %v382 = vpop.f32.mrb[0].mxu0
        %v383 = vadd.f32 0.0, %v382
        %v384 = vpop.f32.mrb[0].mxu0
        %v385 = vpop.f32.mrb[0].mxu0
        %v386 = vpop.f32.mrb[0].mxu0
        %387 = vdwg.mxu0
        %v394 = vunpack.c.l.b16 %v262
        %v395 = vunpack.c.l.b16 %v263
        %v396 = vunpack.c.l.b16 %v264
        %v397 = vunpack.c.l.b16 %v265
        %v398 = vunpack.c.l.b16 %v266
        %v399 = vunpack.c.l.b16 %v267
        %v400 = vpack.c.b16 %v395, %v394
        %v401 = vpack.c.b16 %v397, %v396
        %v402 = vpack.c.b16 %v399, %v398
        %406 = vmatprep.subr.bf16.mxu0 0
        %407 = vmatpush1.bf16.msra.mxu0 %v400
        %408 = vmatprep.subr.bf16.mxu0 0
        %409 = vmatpush1.bf16.msra.mxu0 %v401
        %410 = vmatprep.subr.bf16.mxu0 0
        %411 = vmatpush1.bf16.msra.mxu0 %v402
        %412 = vmatprep.subr.bf16.mxu0 0
        %413 = vmatpush1.bf16.msra.mxu0 0
        %414 = vmatprep.subr.bf16.mxu0 0
        %415 = vmatpush1.bf16.msra.mxu0 0
        %416 = vmatprep.subr.bf16.mxu0 0
        %417 = vmatpush1.bf16.msra.mxu0 0
        %418 = vmatprep.subr.bf16.mxu0 0
        %419 = vmatpush1.bf16.msra.mxu0 0
        %420 = vmatprep.subr.bf16.mxu0 0
        %421 = vmatpush1.bf16.msra.mxu0 0
        %422 = vmatprep.subr.bf16.mxu0 0
        %423 = vmatpush1.bf16.msra.mxu0 0
        %424 = vmatprep.subr.bf16.mxu0 0
        %425 = vmatpush1.bf16.msra.mxu0 0
        %426 = vmatprep.subr.bf16.mxu0 0
        %427 = vmatpush1.bf16.msra.mxu0 0
        %428 = vmatprep.subr.bf16.mxu0 0
        %429 = vmatpush1.bf16.msra.mxu0 0
        %430 = vmatprep.subr.bf16.mxu0 0
        %431 = vmatpush1.bf16.msra.mxu0 0
        %432 = vmatprep.subr.bf16.mxu0 0
        %433 = vmatpush1.bf16.msra.mxu0 0
        %434 = vmatprep.subr.bf16.mxu0 0
        %435 = vmatpush1.bf16.msra.mxu0 0
        %436 = vmatprep.subr.bf16.mxu0 0
        %437 = vmatpush1.bf16.msra.mxu0 0
        %438 = vmatprep.mubr.bf16.mxu0 0
        %439 = vmatmul.mubr.bf16.gmra.mrb[0].mxu0 %v288
        %v440 = vpop.f32.mrb[0].mxu0
        %v441 = vadd.f32 0.0, %v440
        %v442 = vpop.f32.mrb[0].mxu0
        %v443 = vpop.f32.mrb[0].mxu0
        %v444 = vpop.f32.mrb[0].mxu0
        %445 = vdwg.mxu0
        %v446 = vpack.c.bf16 %v325, %v325
        %v447 = vpack.c.bf16 %v383, %v383
        %v448 = vpack.c.bf16 %v441, %v441
        %vm449 = vcmask 64512
        %v451 = vsel %vm449, %v446, 0
        %v454 = vsel %vm449, %v447, 0
        %456 = vmatprep.subr.bf16.mxu0 0
        %457 = vmatpush1.bf16.xpose.msra.mxu0 %v454
        %458 = vmatprep.subr.bf16.mxu0 0
        %459 = vmatpush1.bf16.xpose.msra.mxu0 0
        %460 = vmatprep.subr.bf16.mxu0 0
        %461 = vmatpush1.bf16.xpose.msra.mxu0 0
        %462 = vmatprep.subr.bf16.mxu0 0
        %463 = vmatpush1.bf16.xpose.msra.mxu0 0
        %464 = vmatprep.subr.bf16.mxu0 0
        %465 = vmatpush1.bf16.xpose.msra.mxu0 0
        %466 = vmatprep.subr.bf16.mxu0 0
        %467 = vmatpush1.bf16.xpose.msra.mxu0 0
        %468 = vmatprep.subr.bf16.mxu0 0
        %469 = vmatpush1.bf16.xpose.msra.mxu0 0
        %470 = vmatprep.subr.bf16.mxu0 0
        %471 = vmatpush1.bf16.xpose.msra.mxu0 0
        %472 = vmatprep.subr.bf16.mxu0 0
        %473 = vmatpush1.bf16.xpose.msra.mxu0 0
        %474 = vmatprep.subr.bf16.mxu0 0
        %475 = vmatpush1.bf16.xpose.msra.mxu0 0
        %476 = vmatprep.subr.bf16.mxu0 0
        %477 = vmatpush1.bf16.xpose.msra.mxu0 0
        %478 = vmatprep.subr.bf16.mxu0 0
        %479 = vmatpush1.bf16.xpose.msra.mxu0 0
        %480 = vmatprep.subr.bf16.mxu0 0
        %481 = vmatpush1.bf16.xpose.msra.mxu0 0
        %482 = vmatprep.subr.bf16.mxu0 0
        %483 = vmatpush1.bf16.xpose.msra.mxu0 0
        %484 = vmatprep.subr.bf16.mxu0 0
        %485 = vmatpush1.bf16.xpose.msra.mxu0 0
        %486 = vmatprep.subr.bf16.mxu0 0
        %487 = vmatpush1.bf16.xpose.msra.mxu0 0
        %488 = vmatprep.mubr.bf16.mxu0 0
        %489 = vmatmul.mubr.bf16.gmra.mrb[0].mxu0 %v451
        %v490 = vpop.f32.mrb[0].mxu0
        %v491 = vadd.f32 0.0, %v490
        %v492 = vpop.f32.mrb[0].mxu0
        %v493 = vpop.f32.mrb[0].mxu0
        %v494 = vpop.f32.mrb[0].mxu0
        %495 = vdwg.mxu0
        %v496 = vsel %vm449, %v491, -inf
        %497 = vmax.xlane.f32.xlu0 %v496
        %v498 = vpop.xlane.xlu0 %497
        %v499 = vsub.f32 %v491, %v498
        %v500 = vmul.f32 %v499, 1.442695
        %v501 = vpow.pop %v500
        %v502 = vsel %vm449, %v501, 0.0
        %503 = vadd.xlane.f32.xlu0 %v502
        %v504 = vpop.xlane.xlu0 %503
        %v505 = vrcp.pop %v504
        %v506 = vmul.f32 %v501, %v505
        %v507 = vpack.c.bf16 %v506, %v506
        %v509 = vsel %vm449, %v507, 0
        %vm511 = vcmask 1043456
        %v513 = vsel %vm511, %v448, 0
        %515 = vmatprep.subr.bf16.mxu0 0
        %516 = vmatpush1.bf16.msra.mxu0 %v513
        %517 = vmatprep.subr.bf16.mxu0 0
        %518 = vmatpush1.bf16.msra.mxu0 0
        %519 = vmatprep.subr.bf16.mxu0 0
        %520 = vmatpush1.bf16.msra.mxu0 0
        %521 = vmatprep.subr.bf16.mxu0 0
        %522 = vmatpush1.bf16.msra.mxu0 0
        %523 = vmatprep.subr.bf16.mxu0 0
        %524 = vmatpush1.bf16.msra.mxu0 0
        %525 = vmatprep.subr.bf16.mxu0 0
        %526 = vmatpush1.bf16.msra.mxu0 0
        %527 = vmatprep.subr.bf16.mxu0 0
        %528 = vmatpush1.bf16.msra.mxu0 0
        %529 = vmatprep.subr.bf16.mxu0 0
        %530 = vmatpush1.bf16.msra.mxu0 0
        %531 = vmatprep.subr.bf16.mxu0 0
        %532 = vmatpush1.bf16.msra.mxu0 0
        %533 = vmatprep.subr.bf16.mxu0 0
        %534 = vmatpush1.bf16.msra.mxu0 0
        %535 = vmatprep.subr.bf16.mxu0 0
        %536 = vmatpush1.bf16.msra.mxu0 0
        %537 = vmatprep.subr.bf16.mxu0 0
        %538 = vmatpush1.bf16.msra.mxu0 0
        %539 = vmatprep.subr.bf16.mxu0 0
        %540 = vmatpush1.bf16.msra.mxu0 0
        %541 = vmatprep.subr.bf16.mxu0 0
        %542 = vmatpush1.bf16.msra.mxu0 0
        %543 = vmatprep.subr.bf16.mxu0 0
        %544 = vmatpush1.bf16.msra.mxu0 0
        %545 = vmatprep.subr.bf16.mxu0 0
        %546 = vmatpush1.bf16.msra.mxu0 0
        %547 = vmatprep.mubr.bf16.mxu0 0
        %548 = vmatmul.mubr.bf16.gmra.mrb[0].mxu0 %v509
        %v549 = vpop.f32.mrb[0].mxu0
        %v550 = vadd.f32 0.0, %v549
        %v551 = vpop.f32.mrb[0].mxu0
        %v552 = vpop.f32.mrb[0].mxu0
        %v553 = vpop.f32.mrb[0].mxu0
        %554 = vdwg.mxu0
        %v555 = vpack.c.bf16 %v550, %v550
        %v556 = vld [vmem:[%s4] sm:$0xf]
        %s557 = scalar_lea.vmem %s1, 24
        %v558 = vld [vmem:[%s557] sm:$0xf]
        %v559 = vld [vmem:[%s557 + $0x4] sm:$0xf]
        %v560 = vld [vmem:[%s557 + $0x8] sm:$0xf]
        %v561 = vld [vmem:[%s557 + $0xc] sm:$0xf]
        %v562 = vld [vmem:[%s557 + $0x10] sm:$0xf]
        %v563 = vld [vmem:[%s557 + $0x14] sm:$0xf]
        %s564 = scalar_lea.vmem %s2, 24
        %v565 = vld [vmem:[%s564] sm:$0xf]
        %v566 = vld [vmem:[%s564 + $0x4] sm:$0xf]
        %v567 = vld [vmem:[%s564 + $0x8] sm:$0xf]
        %v568 = vld [vmem:[%s564 + $0xc] sm:$0xf]
        %v569 = vld [vmem:[%s564 + $0x10] sm:$0xf]
        %v570 = vld [vmem:[%s564 + $0x14] sm:$0xf]
        %s571 = scalar_lea.vmem %s3, 24
        %v572 = vld [vmem:[%s571] sm:$0xf]
        %v573 = vld [vmem:[%s571 + $0x4] sm:$0xf]
        %v574 = vld [vmem:[%s571 + $0x8] sm:$0xf]
        %v575 = vld [vmem:[%s571 + $0xc] sm:$0xf]
        %v576 = vld [vmem:[%s571 + $0x10] sm:$0xf]
        %v577 = vld [vmem:[%s571 + $0x14] sm:$0xf]
        %v584 = vunpack.c.l.b16 %v558
        %v585 = vunpack.c.l.b16 %v559
        %v586 = vunpack.c.l.b16 %v560
        %v587 = vunpack.c.l.b16 %v561
        %v588 = vunpack.c.l.b16 %v562
        %v589 = vunpack.c.l.b16 %v563
        %v590 = vpack.c.b16 %v585, %v584
        %v591 = vpack.c.b16 %v587, %v586
        %v592 = vpack.c.b16 %v589, %v588
        %596 = vmatprep.subr.bf16.mxu0 0
        %597 = vmatpush1.bf16.msra.mxu0 %v590
        %598 = vmatprep.subr.bf16.mxu0 0
        %599 = vmatpush1.bf16.msra.mxu0 %v591
        %600 = vmatprep.subr.bf16.mxu0 0
        %601 = vmatpush1.bf16.msra.mxu0 %v592
        %602 = vmatprep.subr.bf16.mxu0 0
        %603 = vmatpush1.bf16.msra.mxu0 0
        %604 = vmatprep.subr.bf16.mxu0 0
        %605 = vmatpush1.bf16.msra.mxu0 0
        %606 = vmatprep.subr.bf16.mxu0 0
        %607 = vmatpush1.bf16.msra.mxu0 0
        %608 = vmatprep.subr.bf16.mxu0 0
        %609 = vmatpush1.bf16.msra.mxu0 0
        %610 = vmatprep.subr.bf16.mxu0 0
        %611 = vmatpush1.bf16.msra.mxu0 0
        %612 = vmatprep.subr.bf16.mxu0 0
        %613 = vmatpush1.bf16.msra.mxu0 0
        %614 = vmatprep.subr.bf16.mxu0 0
        %615 = vmatpush1.bf16.msra.mxu0 0
        %616 = vmatprep.subr.bf16.mxu0 0
        %617 = vmatpush1.bf16.msra.mxu0 0
        %618 = vmatprep.subr.bf16.mxu0 0
        %619 = vmatpush1.bf16.msra.mxu0 0
        %620 = vmatprep.subr.bf16.mxu0 0
        %621 = vmatpush1.bf16.msra.mxu0 0
        %622 = vmatprep.subr.bf16.mxu0 0
        %623 = vmatpush1.bf16.msra.mxu0 0
        %624 = vmatprep.subr.bf16.mxu0 0
        %625 = vmatpush1.bf16.msra.mxu0 0
        %626 = vmatprep.subr.bf16.mxu0 0
        %627 = vmatpush1.bf16.msra.mxu0 0
        %628 = vmatprep.mubr.bf16.mxu0 0
        %629 = vmatmul.mubr.bf16.gmra.mrb[0].mxu0 %v288
        %v630 = vpop.f32.mrb[0].mxu0
        %v631 = vadd.f32 0.0, %v630
        %v632 = vpop.f32.mrb[0].mxu0
        %v633 = vpop.f32.mrb[0].mxu0
        %v634 = vpop.f32.mrb[0].mxu0
        %635 = vdwg.mxu0
        %v642 = vunpack.c.l.b16 %v565
        %v643 = vunpack.c.l.b16 %v566
        %v644 = vunpack.c.l.b16 %v567
        %v645 = vunpack.c.l.b16 %v568
        %v646 = vunpack.c.l.b16 %v569
        %v647 = vunpack.c.l.b16 %v570
        %v648 = vpack.c.b16 %v643, %v642
        %v649 = vpack.c.b16 %v645, %v644
        %v650 = vpack.c.b16 %v647, %v646
        %654 = vmatprep.subr.bf16.mxu0 0
        %655 = vmatpush1.bf16.msra.mxu0 %v648
        %656 = vmatprep.subr.bf16.mxu0 0
        %657 = vmatpush1.bf16.msra.mxu0 %v649
        %658 = vmatprep.subr.bf16.mxu0 0
        %659 = vmatpush1.bf16.msra.mxu0 %v650
        %660 = vmatprep.subr.bf16.mxu0 0
        %661 = vmatpush1.bf16.msra.mxu0 0
        %662 = vmatprep.subr.bf16.mxu0 0
        %663 = vmatpush1.bf16.msra.mxu0 0
        %664 = vmatprep.subr.bf16.mxu0 0
        %665 = vmatpush1.bf16.msra.mxu0 0
        %666 = vmatprep.subr.bf16.mxu0 0
        %667 = vmatpush1.bf16.msra.mxu0 0
        %668 = vmatprep.subr.bf16.mxu0 0
        %669 = vmatpush1.bf16.msra.mxu0 0
        %670 = vmatprep.subr.bf16.mxu0 0
        %671 = vmatpush1.bf16.msra.mxu0 0
        %672 = vmatprep.subr.bf16.mxu0 0
        %673 = vmatpush1.bf16.msra.mxu0 0
        %674 = vmatprep.subr.bf16.mxu0 0
        %675 = vmatpush1.bf16.msra.mxu0 0
        %676 = vmatprep.subr.bf16.mxu0 0
        %677 = vmatpush1.bf16.msra.mxu0 0
        %678 = vmatprep.subr.bf16.mxu0 0
        %679 = vmatpush1.bf16.msra.mxu0 0
        %680 = vmatprep.subr.bf16.mxu0 0
        %681 = vmatpush1.bf16.msra.mxu0 0
        %682 = vmatprep.subr.bf16.mxu0 0
        %683 = vmatpush1.bf16.msra.mxu0 0
        %684 = vmatprep.subr.bf16.mxu0 0
        %685 = vmatpush1.bf16.msra.mxu0 0
        %686 = vmatprep.mubr.bf16.mxu0 0
        %687 = vmatmul.mubr.bf16.gmra.mrb[0].mxu0 %v288
        %v688 = vpop.f32.mrb[0].mxu0
        %v689 = vadd.f32 0.0, %v688
        %v690 = vpop.f32.mrb[0].mxu0
        %v691 = vpop.f32.mrb[0].mxu0
        %v692 = vpop.f32.mrb[0].mxu0
        %693 = vdwg.mxu0
        %v700 = vunpack.c.l.b16 %v572
        %v701 = vunpack.c.l.b16 %v573
        %v702 = vunpack.c.l.b16 %v574
        %v703 = vunpack.c.l.b16 %v575
        %v704 = vunpack.c.l.b16 %v576
        %v705 = vunpack.c.l.b16 %v577
        %v706 = vpack.c.b16 %v701, %v700
        %v707 = vpack.c.b16 %v703, %v702
        %v708 = vpack.c.b16 %v705, %v704
        %712 = vmatprep.subr.bf16.mxu0 0
        %713 = vmatpush1.bf16.msra.mxu0 %v706
        %714 = vmatprep.subr.bf16.mxu0 0
        %715 = vmatpush1.bf16.msra.mxu0 %v707
        %716 = vmatprep.subr.bf16.mxu0 0
        %717 = vmatpush1.bf16.msra.mxu0 %v708
        %718 = vmatprep.subr.bf16.mxu0 0
        %719 = vmatpush1.bf16.msra.mxu0 0
        %720 = vmatprep.subr.bf16.mxu0 0
        %721 = vmatpush1.bf16.msra.mxu0 0
        %722 = vmatprep.subr.bf16.mxu0 0
        %723 = vmatpush1.bf16.msra.mxu0 0
        %724 = vmatprep.subr.bf16.mxu0 0
        %725 = vmatpush1.bf16.msra.mxu0 0
        %726 = vmatprep.subr.bf16.mxu0 0
        %727 = vmatpush1.bf16.msra.mxu0 0
        %728 = vmatprep.subr.bf16.mxu0 0
        %729 = vmatpush1.bf16.msra.mxu0 0
        %730 = vmatprep.subr.bf16.mxu0 0
        %731 = vmatpush1.bf16.msra.mxu0 0
        %732 = vmatprep.subr.bf16.mxu0 0
        %733 = vmatpush1.bf16.msra.mxu0 0
        %734 = vmatprep.subr.bf16.mxu0 0
        %735 = vmatpush1.bf16.msra.mxu0 0
        %736 = vmatprep.subr.bf16.mxu0 0
        %737 = vmatpush1.bf16.msra.mxu0 0
        %738 = vmatprep.subr.bf16.mxu0 0
        %739 = vmatpush1.bf16.msra.mxu0 0
        %740 = vmatprep.subr.bf16.mxu0 0
        %741 = vmatpush1.bf16.msra.mxu0 0
        %742 = vmatprep.subr.bf16.mxu0 0
        %743 = vmatpush1.bf16.msra.mxu0 0
        %744 = vmatprep.mubr.bf16.mxu0 0
        %745 = vmatmul.mubr.bf16.gmra.mrb[0].mxu0 %v288
        %v746 = vpop.f32.mrb[0].mxu0
        %v747 = vadd.f32 0.0, %v746
        %v748 = vpop.f32.mrb[0].mxu0
        %v749 = vpop.f32.mrb[0].mxu0
        %v750 = vpop.f32.mrb[0].mxu0
        %751 = vdwg.mxu0
        %v752 = vpack.c.bf16 %v631, %v631
        %v753 = vpack.c.bf16 %v689, %v689
        %v754 = vpack.c.bf16 %v747, %v747
        %v756 = vsel %vm449, %v752, 0
        %v759 = vsel %vm449, %v753, 0
        %761 = vmatprep.subr.bf16.mxu0 0
        %762 = vmatpush1.bf16.xpose.msra.mxu0 %v759
        %763 = vmatprep.subr.bf16.mxu0 0
        %764 = vmatpush1.bf16.xpose.msra.mxu0 0
        %765 = vmatprep.subr.bf16.mxu0 0
        %766 = vmatpush1.bf16.xpose.msra.mxu0 0
        %767 = vmatprep.subr.bf16.mxu0 0
        %768 = vmatpush1.bf16.xpose.msra.mxu0 0
        %769 = vmatprep.subr.bf16.mxu0 0
        %770 = vmatpush1.bf16.xpose.msra.mxu0 0
        %771 = vmatprep.subr.bf16.mxu0 0
        %772 = vmatpush1.bf16.xpose.msra.mxu0 0
        %773 = vmatprep.subr.bf16.mxu0 0
        %774 = vmatpush1.bf16.xpose.msra.mxu0 0
        %775 = vmatprep.subr.bf16.mxu0 0
        %776 = vmatpush1.bf16.xpose.msra.mxu0 0
        %777 = vmatprep.subr.bf16.mxu0 0
        %778 = vmatpush1.bf16.xpose.msra.mxu0 0
        %779 = vmatprep.subr.bf16.mxu0 0
        %780 = vmatpush1.bf16.xpose.msra.mxu0 0
        %781 = vmatprep.subr.bf16.mxu0 0
        %782 = vmatpush1.bf16.xpose.msra.mxu0 0
        %783 = vmatprep.subr.bf16.mxu0 0
        %784 = vmatpush1.bf16.xpose.msra.mxu0 0
        %785 = vmatprep.subr.bf16.mxu0 0
        %786 = vmatpush1.bf16.xpose.msra.mxu0 0
        %787 = vmatprep.subr.bf16.mxu0 0
        %788 = vmatpush1.bf16.xpose.msra.mxu0 0
        %789 = vmatprep.subr.bf16.mxu0 0
        %790 = vmatpush1.bf16.xpose.msra.mxu0 0
        %791 = vmatprep.subr.bf16.mxu0 0
        %792 = vmatpush1.bf16.xpose.msra.mxu0 0
        %793 = vmatprep.mubr.bf16.mxu0 0
        %794 = vmatmul.mubr.bf16.gmra.mrb[0].mxu0 %v756
        %v795 = vpop.f32.mrb[0].mxu0
        %v796 = vadd.f32 0.0, %v795
        %v797 = vpop.f32.mrb[0].mxu0
        %v798 = vpop.f32.mrb[0].mxu0
        %v799 = vpop.f32.mrb[0].mxu0
        %800 = vdwg.mxu0
        %v801 = vsel %vm449, %v796, -inf
        %802 = vmax.xlane.f32.xlu0 %v801
        %v803 = vpop.xlane.xlu0 %802
        %v804 = vsub.f32 %v796, %v803
        %v805 = vmul.f32 %v804, 1.442695
        %v806 = vpow.pop %v805
        %v807 = vsel %vm449, %v806, 0.0
        %808 = vadd.xlane.f32.xlu0 %v807
        %v809 = vpop.xlane.xlu0 %808
        %v810 = vrcp.pop %v809
        %v811 = vmul.f32 %v806, %v810
        %v812 = vpack.c.bf16 %v811, %v811
        %v814 = vsel %vm449, %v812, 0
        %v817 = vsel %vm511, %v754, 0
        %819 = vmatprep.subr.bf16.mxu0 0
        %820 = vmatpush1.bf16.msra.mxu0 %v817
        %821 = vmatprep.subr.bf16.mxu0 0
        %822 = vmatpush1.bf16.msra.mxu0 0
        %823 = vmatprep.subr.bf16.mxu0 0
        %824 = vmatpush1.bf16.msra.mxu0 0
        %825 = vmatprep.subr.bf16.mxu0 0
        %826 = vmatpush1.bf16.msra.mxu0 0
        %827 = vmatprep.subr.bf16.mxu0 0
        %828 = vmatpush1.bf16.msra.mxu0 0
        %829 = vmatprep.subr.bf16.mxu0 0
        %830 = vmatpush1.bf16.msra.mxu0 0
        %831 = vmatprep.subr.bf16.mxu0 0
        %832 = vmatpush1.bf16.msra.mxu0 0
        %833 = vmatprep.subr.bf16.mxu0 0
        %834 = vmatpush1.bf16.msra.mxu0 0
        %835 = vmatprep.subr.bf16.mxu0 0
        %836 = vmatpush1.bf16.msra.mxu0 0
        %837 = vmatprep.subr.bf16.mxu0 0
        %838 = vmatpush1.bf16.msra.mxu0 0
        %839 = vmatprep.subr.bf16.mxu0 0
        %840 = vmatpush1.bf16.msra.mxu0 0
        %841 = vmatprep.subr.bf16.mxu0 0
        %842 = vmatpush1.bf16.msra.mxu0 0
        %843 = vmatprep.subr.bf16.mxu0 0
        %844 = vmatpush1.bf16.msra.mxu0 0
        %845 = vmatprep.subr.bf16.mxu0 0
        %846 = vmatpush1.bf16.msra.mxu0 0
        %847 = vmatprep.subr.bf16.mxu0 0
        %848 = vmatpush1.bf16.msra.mxu0 0
        %849 = vmatprep.subr.bf16.mxu0 0
        %850 = vmatpush1.bf16.msra.mxu0 0
        %851 = vmatprep.mubr.bf16.mxu0 0
        %852 = vmatmul.mubr.bf16.gmra.mrb[0].mxu0 %v814
        %v853 = vpop.f32.mrb[0].mxu0
        %v854 = vadd.f32 0.0, %v853
        %v855 = vpop.f32.mrb[0].mxu0
        %v856 = vpop.f32.mrb[0].mxu0
        %v857 = vpop.f32.mrb[0].mxu0
        %858 = vdwg.mxu0
        %v859 = vpack.c.bf16 %v854, %v854
        %s860 = scalar_lea.vmem %s4, 4
        %v861 = vld [vmem:[%s860] sm:$0xf]
        %v863 = vsel %vm449, %v859, 0
        %v866 = vsel %vm511, %v861, 0
        %868 = vmatprep.subr.bf16.mxu0 0
        %869 = vmatpush1.bf16.msra.mxu0 %v866
        %870 = vmatprep.subr.bf16.mxu0 0
        %871 = vmatpush1.bf16.msra.mxu0 0
        %872 = vmatprep.subr.bf16.mxu0 0
        %873 = vmatpush1.bf16.msra.mxu0 0
        %874 = vmatprep.subr.bf16.mxu0 0
        %875 = vmatpush1.bf16.msra.mxu0 0
        %876 = vmatprep.subr.bf16.mxu0 0
        %877 = vmatpush1.bf16.msra.mxu0 0
        %878 = vmatprep.subr.bf16.mxu0 0
        %879 = vmatpush1.bf16.msra.mxu0 0
        %880 = vmatprep.subr.bf16.mxu0 0
        %881 = vmatpush1.bf16.msra.mxu0 0
        %882 = vmatprep.subr.bf16.mxu0 0
        %883 = vmatpush1.bf16.msra.mxu0 0
        %884 = vmatprep.subr.bf16.mxu0 0
        %885 = vmatpush1.bf16.msra.mxu0 0
        %886 = vmatprep.subr.bf16.mxu0 0
        %887 = vmatpush1.bf16.msra.mxu0 0
        %888 = vmatprep.subr.bf16.mxu0 0
        %889 = vmatpush1.bf16.msra.mxu0 0
        %890 = vmatprep.subr.bf16.mxu0 0
        %891 = vmatpush1.bf16.msra.mxu0 0
        %892 = vmatprep.subr.bf16.mxu0 0
        %893 = vmatpush1.bf16.msra.mxu0 0
        %894 = vmatprep.subr.bf16.mxu0 0
        %895 = vmatpush1.bf16.msra.mxu0 0
        %896 = vmatprep.subr.bf16.mxu0 0
        %897 = vmatpush1.bf16.msra.mxu0 0
        %898 = vmatprep.subr.bf16.mxu0 0
        %899 = vmatpush1.bf16.msra.mxu0 0
        %900 = vmatprep.mubr.bf16.mxu0 0
        %901 = vmatmul.mubr.bf16.gmra.mrb[0].mxu0 %v863
        %v902 = vpop.f32.mrb[0].mxu0
        %v903 = vadd.f32 0.0, %v902
        %v904 = vpop.f32.mrb[0].mxu0
        %v905 = vpop.f32.mrb[0].mxu0
        %v906 = vpop.f32.mrb[0].mxu0
        %907 = vdwg.mxu0
        %v909 = vsel %vm449, %v555, 0
        %v912 = vsel %vm511, %v556, 0
        %914 = vmatprep.subr.bf16.mxu0 0
        %915 = vmatpush1.bf16.msra.mxu0 %v912
        %916 = vmatprep.subr.bf16.mxu0 0
        %917 = vmatpush1.bf16.msra.mxu0 0
        %918 = vmatprep.subr.bf16.mxu0 0
        %919 = vmatpush1.bf16.msra.mxu0 0
        %920 = vmatprep.subr.bf16.mxu0 0
        %921 = vmatpush1.bf16.msra.mxu0 0
        %922 = vmatprep.subr.bf16.mxu0 0
        %923 = vmatpush1.bf16.msra.mxu0 0
        %924 = vmatprep.subr.bf16.mxu0 0
        %925 = vmatpush1.bf16.msra.mxu0 0
        %926 = vmatprep.subr.bf16.mxu0 0
        %927 = vmatpush1.bf16.msra.mxu0 0
        %928 = vmatprep.subr.bf16.mxu0 0
        %929 = vmatpush1.bf16.msra.mxu0 0
        %930 = vmatprep.subr.bf16.mxu0 0
        %931 = vmatpush1.bf16.msra.mxu0 0
        %932 = vmatprep.subr.bf16.mxu0 0
        %933 = vmatpush1.bf16.msra.mxu0 0
        %934 = vmatprep.subr.bf16.mxu0 0
        %935 = vmatpush1.bf16.msra.mxu0 0
        %936 = vmatprep.subr.bf16.mxu0 0
        %937 = vmatpush1.bf16.msra.mxu0 0
        %938 = vmatprep.subr.bf16.mxu0 0
        %939 = vmatpush1.bf16.msra.mxu0 0
        %940 = vmatprep.subr.bf16.mxu0 0
        %941 = vmatpush1.bf16.msra.mxu0 0
        %942 = vmatprep.subr.bf16.mxu0 0
        %943 = vmatpush1.bf16.msra.mxu0 0
        %944 = vmatprep.subr.bf16.mxu0 0
        %945 = vmatpush1.bf16.msra.mxu0 0
        %946 = vmatprep.mubr.bf16.mxu0 0
        %947 = vmatmul.mubr.bf16.gmra.mrb[0].mxu0 %v909
        %v948 = vpop.f32.mrb[0].mxu0
        %v949 = vadd.f32 %v903, %v948
        %v950 = vpop.f32.mrb[0].mxu0
        %v951 = vpop.f32.mrb[0].mxu0
        %v952 = vpop.f32.mrb[0].mxu0
        %953 = vdwg.mxu0
        %s954 = scalar_lea.vmem %s1, 48
        %v955 = vld [vmem:[%s954] sm:$0xf]
        %v956 = vld [vmem:[%s954 + $0x4] sm:$0xf]
        %v957 = vld [vmem:[%s954 + $0x8] sm:$0xf]
        %v958 = vld [vmem:[%s954 + $0xc] sm:$0xf]
        %v959 = vld [vmem:[%s954 + $0x10] sm:$0xf]
        %v960 = vld [vmem:[%s954 + $0x14] sm:$0xf]
        %s961 = scalar_lea.vmem %s2, 48
        %v962 = vld [vmem:[%s961] sm:$0xf]
        %v963 = vld [vmem:[%s961 + $0x4] sm:$0xf]
        %v964 = vld [vmem:[%s961 + $0x8] sm:$0xf]
        %v965 = vld [vmem:[%s961 + $0xc] sm:$0xf]
        %v966 = vld [vmem:[%s961 + $0x10] sm:$0xf]
        %v967 = vld [vmem:[%s961 + $0x14] sm:$0xf]
        %s968 = scalar_lea.vmem %s3, 48
        %v969 = vld [vmem:[%s968] sm:$0xf]
        %v970 = vld [vmem:[%s968 + $0x4] sm:$0xf]
        %v971 = vld [vmem:[%s968 + $0x8] sm:$0xf]
        %v972 = vld [vmem:[%s968 + $0xc] sm:$0xf]
        %v973 = vld [vmem:[%s968 + $0x10] sm:$0xf]
        %v974 = vld [vmem:[%s968 + $0x14] sm:$0xf]
        %v981 = vunpack.c.l.b16 %v955
        %v982 = vunpack.c.l.b16 %v956
        %v983 = vunpack.c.l.b16 %v957
        %v984 = vunpack.c.l.b16 %v958
        %v985 = vunpack.c.l.b16 %v959
        %v986 = vunpack.c.l.b16 %v960
        %v987 = vpack.c.b16 %v982, %v981
        %v988 = vpack.c.b16 %v984, %v983
        %v989 = vpack.c.b16 %v986, %v985
        %993 = vmatprep.subr.bf16.mxu0 0
        %994 = vmatpush1.bf16.msra.mxu0 %v987
        %995 = vmatprep.subr.bf16.mxu0 0
        %996 = vmatpush1.bf16.msra.mxu0 %v988
        %997 = vmatprep.subr.bf16.mxu0 0
        %998 = vmatpush1.bf16.msra.mxu0 %v989
        %999 = vmatprep.subr.bf16.mxu0 0
        %1000 = vmatpush1.bf16.msra.mxu0 0
        %1001 = vmatprep.subr.bf16.mxu0 0
        %1002 = vmatpush1.bf16.msra.mxu0 0
        %1003 = vmatprep.subr.bf16.mxu0 0
        %1004 = vmatpush1.bf16.msra.mxu0 0
        %1005 = vmatprep.subr.bf16.mxu0 0
        %1006 = vmatpush1.bf16.msra.mxu0 0
        %1007 = vmatprep.subr.bf16.mxu0 0
        %1008 = vmatpush1.bf16.msra.mxu0 0
        %1009 = vmatprep.subr.bf16.mxu0 0
        %1010 = vmatpush1.bf16.msra.mxu0 0
        %1011 = vmatprep.subr.bf16.mxu0 0
        %1012 = vmatpush1.bf16.msra.mxu0 0
        %1013 = vmatprep.subr.bf16.mxu0 0
        %1014 = vmatpush1.bf16.msra.mxu0 0
        %1015 = vmatprep.subr.bf16.mxu0 0
        %1016 = vmatpush1.bf16.msra.mxu0 0
        %1017 = vmatprep.subr.bf16.mxu0 0
        %1018 = vmatpush1.bf16.msra.mxu0 0
        %1019 = vmatprep.subr.bf16.mxu0 0
        %1020 = vmatpush1.bf16.msra.mxu0 0
        %1021 = vmatprep.subr.bf16.mxu0 0
        %1022 = vmatpush1.bf16.msra.mxu0 0
        %1023 = vmatprep.subr.bf16.mxu0 0
        %1024 = vmatpush1.bf16.msra.mxu0 0
        %1025 = vmatprep.mubr.bf16.mxu0 0
        %1026 = vmatmul.mubr.bf16.gmra.mrb[0].mxu0 %v288
        %v1027 = vpop.f32.mrb[0].mxu0
        %v1028 = vadd.f32 0.0, %v1027
        %v1029 = vpop.f32.mrb[0].mxu0
        %v1030 = vpop.f32.mrb[0].mxu0
        %v1031 = vpop.f32.mrb[0].mxu0
        %1032 = vdwg.mxu0
        %v1039 = vunpack.c.l.b16 %v962
        %v1040 = vunpack.c.l.b16 %v963
        %v1041 = vunpack.c.l.b16 %v964
        %v1042 = vunpack.c.l.b16 %v965
        %v1043 = vunpack.c.l.b16 %v966
        %v1044 = vunpack.c.l.b16 %v967
        %v1045 = vpack.c.b16 %v1040, %v1039
        %v1046 = vpack.c.b16 %v1042, %v1041
        %v1047 = vpack.c.b16 %v1044, %v1043
        %1051 = vmatprep.subr.bf16.mxu0 0
        %1052 = vmatpush1.bf16.msra.mxu0 %v1045
        %1053 = vmatprep.subr.bf16.mxu0 0
        %1054 = vmatpush1.bf16.msra.mxu0 %v1046
        %1055 = vmatprep.subr.bf16.mxu0 0
        %1056 = vmatpush1.bf16.msra.mxu0 %v1047
        %1057 = vmatprep.subr.bf16.mxu0 0
        %1058 = vmatpush1.bf16.msra.mxu0 0
        %1059 = vmatprep.subr.bf16.mxu0 0
        %1060 = vmatpush1.bf16.msra.mxu0 0
        %1061 = vmatprep.subr.bf16.mxu0 0
        %1062 = vmatpush1.bf16.msra.mxu0 0
        %1063 = vmatprep.subr.bf16.mxu0 0
        %1064 = vmatpush1.bf16.msra.mxu0 0
        %1065 = vmatprep.subr.bf16.mxu0 0
        %1066 = vmatpush1.bf16.msra.mxu0 0
        %1067 = vmatprep.subr.bf16.mxu0 0
        %1068 = vmatpush1.bf16.msra.mxu0 0
        %1069 = vmatprep.subr.bf16.mxu0 0
        %1070 = vmatpush1.bf16.msra.mxu0 0
        %1071 = vmatprep.subr.bf16.mxu0 0
        %1072 = vmatpush1.bf16.msra.mxu0 0
        %1073 = vmatprep.subr.bf16.mxu0 0
        %1074 = vmatpush1.bf16.msra.mxu0 0
        %1075 = vmatprep.subr.bf16.mxu0 0
        %1076 = vmatpush1.bf16.msra.mxu0 0
        %1077 = vmatprep.subr.bf16.mxu0 0
        %1078 = vmatpush1.bf16.msra.mxu0 0
        %1079 = vmatprep.subr.bf16.mxu0 0
        %1080 = vmatpush1.bf16.msra.mxu0 0
        %1081 = vmatprep.subr.bf16.mxu0 0
        %1082 = vmatpush1.bf16.msra.mxu0 0
        %1083 = vmatprep.mubr.bf16.mxu0 0
        %1084 = vmatmul.mubr.bf16.gmra.mrb[0].mxu0 %v288
        %v1085 = vpop.f32.mrb[0].mxu0
        %v1086 = vadd.f32 0.0, %v1085
        %v1087 = vpop.f32.mrb[0].mxu0
        %v1088 = vpop.f32.mrb[0].mxu0
        %v1089 = vpop.f32.mrb[0].mxu0
        %1090 = vdwg.mxu0
        %v1097 = vunpack.c.l.b16 %v969
        %v1098 = vunpack.c.l.b16 %v970
        %v1099 = vunpack.c.l.b16 %v971
        %v1100 = vunpack.c.l.b16 %v972
        %v1101 = vunpack.c.l.b16 %v973
        %v1102 = vunpack.c.l.b16 %v974
        %v1103 = vpack.c.b16 %v1098, %v1097
        %v1104 = vpack.c.b16 %v1100, %v1099
        %v1105 = vpack.c.b16 %v1102, %v1101
        %1109 = vmatprep.subr.bf16.mxu0 0
        %1110 = vmatpush1.bf16.msra.mxu0 %v1103
        %1111 = vmatprep.subr.bf16.mxu0 0
        %1112 = vmatpush1.bf16.msra.mxu0 %v1104
        %1113 = vmatprep.subr.bf16.mxu0 0
        %1114 = vmatpush1.bf16.msra.mxu0 %v1105
        %1115 = vmatprep.subr.bf16.mxu0 0
        %1116 = vmatpush1.bf16.msra.mxu0 0
        %1117 = vmatprep.subr.bf16.mxu0 0
        %1118 = vmatpush1.bf16.msra.mxu0 0
        %1119 = vmatprep.subr.bf16.mxu0 0
        %1120 = vmatpush1.bf16.msra.mxu0 0
        %1121 = vmatprep.subr.bf16.mxu0 0
        %1122 = vmatpush1.bf16.msra.mxu0 0
        %1123 = vmatprep.subr.bf16.mxu0 0
        %1124 = vmatpush1.bf16.msra.mxu0 0
        %1125 = vmatprep.subr.bf16.mxu0 0
        %1126 = vmatpush1.bf16.msra.mxu0 0
        %1127 = vmatprep.subr.bf16.mxu0 0
        %1128 = vmatpush1.bf16.msra.mxu0 0
        %1129 = vmatprep.subr.bf16.mxu0 0
        %1130 = vmatpush1.bf16.msra.mxu0 0
        %1131 = vmatprep.subr.bf16.mxu0 0
        %1132 = vmatpush1.bf16.msra.mxu0 0
        %1133 = vmatprep.subr.bf16.mxu0 0
        %1134 = vmatpush1.bf16.msra.mxu0 0
        %1135 = vmatprep.subr.bf16.mxu0 0
        %1136 = vmatpush1.bf16.msra.mxu0 0
        %1137 = vmatprep.subr.bf16.mxu0 0
        %1138 = vmatpush1.bf16.msra.mxu0 0
        %1139 = vmatprep.subr.bf16.mxu0 0
        %1140 = vmatpush1.bf16.msra.mxu0 0
        %1141 = vmatprep.mubr.bf16.mxu0 0
        %1142 = vmatmul.mubr.bf16.gmra.mrb[0].mxu0 %v288
        %v1143 = vpop.f32.mrb[0].mxu0
        %v1144 = vadd.f32 0.0, %v1143
        %v1145 = vpop.f32.mrb[0].mxu0
        %v1146 = vpop.f32.mrb[0].mxu0
        %v1147 = vpop.f32.mrb[0].mxu0
        %1148 = vdwg.mxu0
        %v1149 = vpack.c.bf16 %v1028, %v1028
        %v1150 = vpack.c.bf16 %v1086, %v1086
        %v1151 = vpack.c.bf16 %v1144, %v1144
        %v1153 = vsel %vm449, %v1149, 0
        %v1156 = vsel %vm449, %v1150, 0
        %1158 = vmatprep.subr.bf16.mxu0 0
        %1159 = vmatpush1.bf16.xpose.msra.mxu0 %v1156
        %1160 = vmatprep.subr.bf16.mxu0 0
        %1161 = vmatpush1.bf16.xpose.msra.mxu0 0
        %1162 = vmatprep.subr.bf16.mxu0 0
        %1163 = vmatpush1.bf16.xpose.msra.mxu0 0
        %1164 = vmatprep.subr.bf16.mxu0 0
        %1165 = vmatpush1.bf16.xpose.msra.mxu0 0
        %1166 = vmatprep.subr.bf16.mxu0 0
        %1167 = vmatpush1.bf16.xpose.msra.mxu0 0
        %1168 = vmatprep.subr.bf16.mxu0 0
        %1169 = vmatpush1.bf16.xpose.msra.mxu0 0
        %1170 = vmatprep.subr.bf16.mxu0 0
        %1171 = vmatpush1.bf16.xpose.msra.mxu0 0
        %1172 = vmatprep.subr.bf16.mxu0 0
        %1173 = vmatpush1.bf16.xpose.msra.mxu0 0
        %1174 = vmatprep.subr.bf16.mxu0 0
        %1175 = vmatpush1.bf16.xpose.msra.mxu0 0
        %1176 = vmatprep.subr.bf16.mxu0 0
        %1177 = vmatpush1.bf16.xpose.msra.mxu0 0
        %1178 = vmatprep.subr.bf16.mxu0 0
        %1179 = vmatpush1.bf16.xpose.msra.mxu0 0
        %1180 = vmatprep.subr.bf16.mxu0 0
        %1181 = vmatpush1.bf16.xpose.msra.mxu0 0
        %1182 = vmatprep.subr.bf16.mxu0 0
        %1183 = vmatpush1.bf16.xpose.msra.mxu0 0
        %1184 = vmatprep.subr.bf16.mxu0 0
        %1185 = vmatpush1.bf16.xpose.msra.mxu0 0
        %1186 = vmatprep.subr.bf16.mxu0 0
        %1187 = vmatpush1.bf16.xpose.msra.mxu0 0
        %1188 = vmatprep.subr.bf16.mxu0 0
        %1189 = vmatpush1.bf16.xpose.msra.mxu0 0
        %1190 = vmatprep.mubr.bf16.mxu0 0
        %1191 = vmatmul.mubr.bf16.gmra.mrb[0].mxu0 %v1153
        %v1192 = vpop.f32.mrb[0].mxu0
        %v1193 = vadd.f32 0.0, %v1192
        %v1194 = vpop.f32.mrb[0].mxu0
        %v1195 = vpop.f32.mrb[0].mxu0
        %v1196 = vpop.f32.mrb[0].mxu0
        %1197 = vdwg.mxu0
        %v1198 = vsel %vm449, %v1193, -inf
        %1199 = vmax.xlane.f32.xlu0 %v1198
        %v1200 = vpop.xlane.xlu0 %1199
        %v1201 = vsub.f32 %v1193, %v1200
        %v1202 = vmul.f32 %v1201, 1.442695
        %v1203 = vpow.pop %v1202
        %v1204 = vsel %vm449, %v1203, 0.0
        %1205 = vadd.xlane.f32.xlu0 %v1204
        %v1206 = vpop.xlane.xlu0 %1205
        %v1207 = vrcp.pop %v1206
        %v1208 = vmul.f32 %v1203, %v1207
        %v1209 = vpack.c.bf16 %v1208, %v1208
        %v1211 = vsel %vm449, %v1209, 0
        %v1214 = vsel %vm511, %v1151, 0
        %1216 = vmatprep.subr.bf16.mxu0 0
        %1217 = vmatpush1.bf16.msra.mxu0 %v1214
        %1218 = vmatprep.subr.bf16.mxu0 0
        %1219 = vmatpush1.bf16.msra.mxu0 0
        %1220 = vmatprep.subr.bf16.mxu0 0
        %1221 = vmatpush1.bf16.msra.mxu0 0
        %1222 = vmatprep.subr.bf16.mxu0 0
        %1223 = vmatpush1.bf16.msra.mxu0 0
        %1224 = vmatprep.subr.bf16.mxu0 0
        %1225 = vmatpush1.bf16.msra.mxu0 0
        %1226 = vmatprep.subr.bf16.mxu0 0
        %1227 = vmatpush1.bf16.msra.mxu0 0
        %1228 = vmatprep.subr.bf16.mxu0 0
        %1229 = vmatpush1.bf16.msra.mxu0 0
        %1230 = vmatprep.subr.bf16.mxu0 0
        %1231 = vmatpush1.bf16.msra.mxu0 0
        %1232 = vmatprep.subr.bf16.mxu0 0
        %1233 = vmatpush1.bf16.msra.mxu0 0
        %1234 = vmatprep.subr.bf16.mxu0 0
        %1235 = vmatpush1.bf16.msra.mxu0 0
        %1236 = vmatprep.subr.bf16.mxu0 0
        %1237 = vmatpush1.bf16.msra.mxu0 0
        %1238 = vmatprep.subr.bf16.mxu0 0
        %1239 = vmatpush1.bf16.msra.mxu0 0
        %1240 = vmatprep.subr.bf16.mxu0 0
        %1241 = vmatpush1.bf16.msra.mxu0 0
        %1242 = vmatprep.subr.bf16.mxu0 0
        %1243 = vmatpush1.bf16.msra.mxu0 0
        %1244 = vmatprep.subr.bf16.mxu0 0
        %1245 = vmatpush1.bf16.msra.mxu0 0
        %1246 = vmatprep.subr.bf16.mxu0 0
        %1247 = vmatpush1.bf16.msra.mxu0 0
        %1248 = vmatprep.mubr.bf16.mxu0 0
        %1249 = vmatmul.mubr.bf16.gmra.mrb[0].mxu0 %v1211
        %v1250 = vpop.f32.mrb[0].mxu0
        %v1251 = vadd.f32 0.0, %v1250
        %v1252 = vpop.f32.mrb[0].mxu0
        %v1253 = vpop.f32.mrb[0].mxu0
        %v1254 = vpop.f32.mrb[0].mxu0
        %1255 = vdwg.mxu0
        %v1256 = vpack.c.bf16 %v1251, %v1251
        %s1257 = scalar_lea.vmem %s4, 8
        %v1258 = vld [vmem:[%s1257] sm:$0xf]
        %v1260 = vsel %vm449, %v1256, 0
        %v1263 = vsel %vm511, %v1258, 0
        %1265 = vmatprep.subr.bf16.mxu0 0
        %1266 = vmatpush1.bf16.msra.mxu0 %v1263
        %1267 = vmatprep.subr.bf16.mxu0 0
        %1268 = vmatpush1.bf16.msra.mxu0 0
        %1269 = vmatprep.subr.bf16.mxu0 0
        %1270 = vmatpush1.bf16.msra.mxu0 0
        %1271 = vmatprep.subr.bf16.mxu0 0
        %1272 = vmatpush1.bf16.msra.mxu0 0
        %1273 = vmatprep.subr.bf16.mxu0 0
        %1274 = vmatpush1.bf16.msra.mxu0 0
        %1275 = vmatprep.subr.bf16.mxu0 0
        %1276 = vmatpush1.bf16.msra.mxu0 0
        %1277 = vmatprep.subr.bf16.mxu0 0
        %1278 = vmatpush1.bf16.msra.mxu0 0
        %1279 = vmatprep.subr.bf16.mxu0 0
        %1280 = vmatpush1.bf16.msra.mxu0 0
        %1281 = vmatprep.subr.bf16.mxu0 0
        %1282 = vmatpush1.bf16.msra.mxu0 0
        %1283 = vmatprep.subr.bf16.mxu0 0
        %1284 = vmatpush1.bf16.msra.mxu0 0
        %1285 = vmatprep.subr.bf16.mxu0 0
        %1286 = vmatpush1.bf16.msra.mxu0 0
        %1287 = vmatprep.subr.bf16.mxu0 0
        %1288 = vmatpush1.bf16.msra.mxu0 0
        %1289 = vmatprep.subr.bf16.mxu0 0
        %1290 = vmatpush1.bf16.msra.mxu0 0
        %1291 = vmatprep.subr.bf16.mxu0 0
        %1292 = vmatpush1.bf16.msra.mxu0 0
        %1293 = vmatprep.subr.bf16.mxu0 0
        %1294 = vmatpush1.bf16.msra.mxu0 0
        %1295 = vmatprep.subr.bf16.mxu0 0
        %1296 = vmatpush1.bf16.msra.mxu0 0
        %1297 = vmatprep.mubr.bf16.mxu0 0
        %1298 = vmatmul.mubr.bf16.gmra.mrb[0].mxu0 %v1260
        %v1299 = vpop.f32.mrb[0].mxu0
        %v1300 = vadd.f32 0.0, %v1299
        %v1301 = vpop.f32.mrb[0].mxu0
        %v1302 = vpop.f32.mrb[0].mxu0
        %v1303 = vpop.f32.mrb[0].mxu0
        %1304 = vdwg.mxu0
        %v1305 = vadd.f32 %v949, %v1300
        %s1306 = scalar_lea.vmem %s1, 72
        %v1307 = vld [vmem:[%s1306] sm:$0xf]
        %v1308 = vld [vmem:[%s1306 + $0x4] sm:$0xf]
        %v1309 = vld [vmem:[%s1306 + $0x8] sm:$0xf]
        %v1310 = vld [vmem:[%s1306 + $0xc] sm:$0xf]
        %v1311 = vld [vmem:[%s1306 + $0x10] sm:$0xf]
        %v1312 = vld [vmem:[%s1306 + $0x14] sm:$0xf]
        %s1313 = scalar_lea.vmem %s2, 72
        %v1314 = vld [vmem:[%s1313] sm:$0xf]
        %v1315 = vld [vmem:[%s1313 + $0x4] sm:$0xf]
        %v1316 = vld [vmem:[%s1313 + $0x8] sm:$0xf]
        %v1317 = vld [vmem:[%s1313 + $0xc] sm:$0xf]
        %v1318 = vld [vmem:[%s1313 + $0x10] sm:$0xf]
        %v1319 = vld [vmem:[%s1313 + $0x14] sm:$0xf]
        %s1320 = scalar_lea.vmem %s3, 72
        %v1321 = vld [vmem:[%s1320] sm:$0xf]
        %v1322 = vld [vmem:[%s1320 + $0x4] sm:$0xf]
        %v1323 = vld [vmem:[%s1320 + $0x8] sm:$0xf]
        %v1324 = vld [vmem:[%s1320 + $0xc] sm:$0xf]
        %v1325 = vld [vmem:[%s1320 + $0x10] sm:$0xf]
        %v1326 = vld [vmem:[%s1320 + $0x14] sm:$0xf]
        %v1333 = vunpack.c.l.b16 %v1307
        %v1334 = vunpack.c.l.b16 %v1308
        %v1335 = vunpack.c.l.b16 %v1309
        %v1336 = vunpack.c.l.b16 %v1310
        %v1337 = vunpack.c.l.b16 %v1311
        %v1338 = vunpack.c.l.b16 %v1312
        %v1339 = vpack.c.b16 %v1334, %v1333
        %v1340 = vpack.c.b16 %v1336, %v1335
        %v1341 = vpack.c.b16 %v1338, %v1337
        %1345 = vmatprep.subr.bf16.mxu0 0
        %1346 = vmatpush1.bf16.msra.mxu0 %v1339
        %1347 = vmatprep.subr.bf16.mxu0 0
        %1348 = vmatpush1.bf16.msra.mxu0 %v1340
        %1349 = vmatprep.subr.bf16.mxu0 0
        %1350 = vmatpush1.bf16.msra.mxu0 %v1341
        %1351 = vmatprep.subr.bf16.mxu0 0
        %1352 = vmatpush1.bf16.msra.mxu0 0
        %1353 = vmatprep.subr.bf16.mxu0 0
        %1354 = vmatpush1.bf16.msra.mxu0 0
        %1355 = vmatprep.subr.bf16.mxu0 0
        %1356 = vmatpush1.bf16.msra.mxu0 0
        %1357 = vmatprep.subr.bf16.mxu0 0
        %1358 = vmatpush1.bf16.msra.mxu0 0
        %1359 = vmatprep.subr.bf16.mxu0 0
        %1360 = vmatpush1.bf16.msra.mxu0 0
        %1361 = vmatprep.subr.bf16.mxu0 0
        %1362 = vmatpush1.bf16.msra.mxu0 0
        %1363 = vmatprep.subr.bf16.mxu0 0
        %1364 = vmatpush1.bf16.msra.mxu0 0
        %1365 = vmatprep.subr.bf16.mxu0 0
        %1366 = vmatpush1.bf16.msra.mxu0 0
        %1367 = vmatprep.subr.bf16.mxu0 0
        %1368 = vmatpush1.bf16.msra.mxu0 0
        %1369 = vmatprep.subr.bf16.mxu0 0
        %1370 = vmatpush1.bf16.msra.mxu0 0
        %1371 = vmatprep.subr.bf16.mxu0 0
        %1372 = vmatpush1.bf16.msra.mxu0 0
        %1373 = vmatprep.subr.bf16.mxu0 0
        %1374 = vmatpush1.bf16.msra.mxu0 0
        %1375 = vmatprep.subr.bf16.mxu0 0
        %1376 = vmatpush1.bf16.msra.mxu0 0
        %1377 = vmatprep.mubr.bf16.mxu0 0
        %1378 = vmatmul.mubr.bf16.gmra.mrb[0].mxu0 %v288
        %v1379 = vpop.f32.mrb[0].mxu0
        %v1380 = vadd.f32 0.0, %v1379
        %v1381 = vpop.f32.mrb[0].mxu0
        %v1382 = vpop.f32.mrb[0].mxu0
        %v1383 = vpop.f32.mrb[0].mxu0
        %1384 = vdwg.mxu0
        %v1391 = vunpack.c.l.b16 %v1314
        %v1392 = vunpack.c.l.b16 %v1315
        %v1393 = vunpack.c.l.b16 %v1316
        %v1394 = vunpack.c.l.b16 %v1317
        %v1395 = vunpack.c.l.b16 %v1318
        %v1396 = vunpack.c.l.b16 %v1319
        %v1397 = vpack.c.b16 %v1392, %v1391
        %v1398 = vpack.c.b16 %v1394, %v1393
        %v1399 = vpack.c.b16 %v1396, %v1395
        %1403 = vmatprep.subr.bf16.mxu0 0
        %1404 = vmatpush1.bf16.msra.mxu0 %v1397
        %1405 = vmatprep.subr.bf16.mxu0 0
        %1406 = vmatpush1.bf16.msra.mxu0 %v1398
        %1407 = vmatprep.subr.bf16.mxu0 0
        %1408 = vmatpush1.bf16.msra.mxu0 %v1399
        %1409 = vmatprep.subr.bf16.mxu0 0
        %1410 = vmatpush1.bf16.msra.mxu0 0
        %1411 = vmatprep.subr.bf16.mxu0 0
        %1412 = vmatpush1.bf16.msra.mxu0 0
        %1413 = vmatprep.subr.bf16.mxu0 0
        %1414 = vmatpush1.bf16.msra.mxu0 0
        %1415 = vmatprep.subr.bf16.mxu0 0
        %1416 = vmatpush1.bf16.msra.mxu0 0
        %1417 = vmatprep.subr.bf16.mxu0 0
        %1418 = vmatpush1.bf16.msra.mxu0 0
        %1419 = vmatprep.subr.bf16.mxu0 0
        %1420 = vmatpush1.bf16.msra.mxu0 0
        %1421 = vmatprep.subr.bf16.mxu0 0
        %1422 = vmatpush1.bf16.msra.mxu0 0
        %1423 = vmatprep.subr.bf16.mxu0 0
        %1424 = vmatpush1.bf16.msra.mxu0 0
        %1425 = vmatprep.subr.bf16.mxu0 0
        %1426 = vmatpush1.bf16.msra.mxu0 0
        %1427 = vmatprep.subr.bf16.mxu0 0
        %1428 = vmatpush1.bf16.msra.mxu0 0
        %1429 = vmatprep.subr.bf16.mxu0 0
        %1430 = vmatpush1.bf16.msra.mxu0 0
        %1431 = vmatprep.subr.bf16.mxu0 0
        %1432 = vmatpush1.bf16.msra.mxu0 0
        %1433 = vmatprep.subr.bf16.mxu0 0
        %1434 = vmatpush1.bf16.msra.mxu0 0
        %1435 = vmatprep.mubr.bf16.mxu0 0
        %1436 = vmatmul.mubr.bf16.gmra.mrb[0].mxu0 %v288
        %v1437 = vpop.f32.mrb[0].mxu0
        %v1438 = vadd.f32 0.0, %v1437
        %v1439 = vpop.f32.mrb[0].mxu0
        %v1440 = vpop.f32.mrb[0].mxu0
        %v1441 = vpop.f32.mrb[0].mxu0
        %1442 = vdwg.mxu0
        %v1449 = vunpack.c.l.b16 %v1321
        %v1450 = vunpack.c.l.b16 %v1322
        %v1451 = vunpack.c.l.b16 %v1323
        %v1452 = vunpack.c.l.b16 %v1324
        %v1453 = vunpack.c.l.b16 %v1325
        %v1454 = vunpack.c.l.b16 %v1326
        %v1455 = vpack.c.b16 %v1450, %v1449
        %v1456 = vpack.c.b16 %v1452, %v1451
        %v1457 = vpack.c.b16 %v1454, %v1453
        %1461 = vmatprep.subr.bf16.mxu0 0
        %1462 = vmatpush1.bf16.msra.mxu0 %v1455
        %1463 = vmatprep.subr.bf16.mxu0 0
        %1464 = vmatpush1.bf16.msra.mxu0 %v1456
        %1465 = vmatprep.subr.bf16.mxu0 0
        %1466 = vmatpush1.bf16.msra.mxu0 %v1457
        %1467 = vmatprep.subr.bf16.mxu0 0
        %1468 = vmatpush1.bf16.msra.mxu0 0
        %1469 = vmatprep.subr.bf16.mxu0 0
        %1470 = vmatpush1.bf16.msra.mxu0 0
        %1471 = vmatprep.subr.bf16.mxu0 0
        %1472 = vmatpush1.bf16.msra.mxu0 0
        %1473 = vmatprep.subr.bf16.mxu0 0
        %1474 = vmatpush1.bf16.msra.mxu0 0
        %1475 = vmatprep.subr.bf16.mxu0 0
        %1476 = vmatpush1.bf16.msra.mxu0 0
        %1477 = vmatprep.subr.bf16.mxu0 0
        %1478 = vmatpush1.bf16.msra.mxu0 0
        %1479 = vmatprep.subr.bf16.mxu0 0
        %1480 = vmatpush1.bf16.msra.mxu0 0
        %1481 = vmatprep.subr.bf16.mxu0 0
        %1482 = vmatpush1.bf16.msra.mxu0 0
        %1483 = vmatprep.subr.bf16.mxu0 0
        %1484 = vmatpush1.bf16.msra.mxu0 0
        %1485 = vmatprep.subr.bf16.mxu0 0
        %1486 = vmatpush1.bf16.msra.mxu0 0
        %1487 = vmatprep.subr.bf16.mxu0 0
        %1488 = vmatpush1.bf16.msra.mxu0 0
        %1489 = vmatprep.subr.bf16.mxu0 0
        %1490 = vmatpush1.bf16.msra.mxu0 0
        %1491 = vmatprep.subr.bf16.mxu0 0
        %1492 = vmatpush1.bf16.msra.mxu0 0
        %1493 = vmatprep.mubr.bf16.mxu0 0
        %1494 = vmatmul.mubr.bf16.gmra.mrb[0].mxu0 %v288
        %v1495 = vpop.f32.mrb[0].mxu0
        %v1496 = vadd.f32 0.0, %v1495
        %v1497 = vpop.f32.mrb[0].mxu0
        %v1498 = vpop.f32.mrb[0].mxu0
        %v1499 = vpop.f32.mrb[0].mxu0
        %1500 = vdwg.mxu0
        %v1501 = vpack.c.bf16 %v1380, %v1380
        %v1502 = vpack.c.bf16 %v1438, %v1438
        %v1503 = vpack.c.bf16 %v1496, %v1496
        %v1505 = vsel %vm449, %v1501, 0
        %v1508 = vsel %vm449, %v1502, 0
        %1510 = vmatprep.subr.bf16.mxu0 0
        %1511 = vmatpush1.bf16.xpose.msra.mxu0 %v1508
        %1512 = vmatprep.subr.bf16.mxu0 0
        %1513 = vmatpush1.bf16.xpose.msra.mxu0 0
        %1514 = vmatprep.subr.bf16.mxu0 0
        %1515 = vmatpush1.bf16.xpose.msra.mxu0 0
        %1516 = vmatprep.subr.bf16.mxu0 0
        %1517 = vmatpush1.bf16.xpose.msra.mxu0 0
        %1518 = vmatprep.subr.bf16.mxu0 0
        %1519 = vmatpush1.bf16.xpose.msra.mxu0 0
        %1520 = vmatprep.subr.bf16.mxu0 0
        %1521 = vmatpush1.bf16.xpose.msra.mxu0 0
        %1522 = vmatprep.subr.bf16.mxu0 0
        %1523 = vmatpush1.bf16.xpose.msra.mxu0 0
        %1524 = vmatprep.subr.bf16.mxu0 0
        %1525 = vmatpush1.bf16.xpose.msra.mxu0 0
        %1526 = vmatprep.subr.bf16.mxu0 0
        %1527 = vmatpush1.bf16.xpose.msra.mxu0 0
        %1528 = vmatprep.subr.bf16.mxu0 0
        %1529 = vmatpush1.bf16.xpose.msra.mxu0 0
        %1530 = vmatprep.subr.bf16.mxu0 0
        %1531 = vmatpush1.bf16.xpose.msra.mxu0 0
        %1532 = vmatprep.subr.bf16.mxu0 0
        %1533 = vmatpush1.bf16.xpose.msra.mxu0 0
        %1534 = vmatprep.subr.bf16.mxu0 0
        %1535 = vmatpush1.bf16.xpose.msra.mxu0 0
        %1536 = vmatprep.subr.bf16.mxu0 0
        %1537 = vmatpush1.bf16.xpose.msra.mxu0 0
        %1538 = vmatprep.subr.bf16.mxu0 0
        %1539 = vmatpush1.bf16.xpose.msra.mxu0 0
        %1540 = vmatprep.subr.bf16.mxu0 0
        %1541 = vmatpush1.bf16.xpose.msra.mxu0 0
        %1542 = vmatprep.mubr.bf16.mxu0 0
        %1543 = vmatmul.mubr.bf16.gmra.mrb[0].mxu0 %v1505
        %v1544 = vpop.f32.mrb[0].mxu0
        %v1545 = vadd.f32 0.0, %v1544
        %v1546 = vpop.f32.mrb[0].mxu0
        %v1547 = vpop.f32.mrb[0].mxu0
        %v1548 = vpop.f32.mrb[0].mxu0
        %1549 = vdwg.mxu0
        %v1550 = vsel %vm449, %v1545, -inf
        %1551 = vmax.xlane.f32.xlu0 %v1550
        %v1552 = vpop.xlane.xlu0 %1551
        %v1553 = vsub.f32 %v1545, %v1552
        %v1554 = vmul.f32 %v1553, 1.442695
        %v1555 = vpow.pop %v1554
        %v1556 = vsel %vm449, %v1555, 0.0
        %1557 = vadd.xlane.f32.xlu0 %v1556
        %v1558 = vpop.xlane.xlu0 %1557
        %v1559 = vrcp.pop %v1558
        %v1560 = vmul.f32 %v1555, %v1559
        %v1561 = vpack.c.bf16 %v1560, %v1560
        %v1563 = vsel %vm449, %v1561, 0
        %v1566 = vsel %vm511, %v1503, 0
        %1568 = vmatprep.subr.bf16.mxu0 0
        %1569 = vmatpush1.bf16.msra.mxu0 %v1566
        %1570 = vmatprep.subr.bf16.mxu0 0
        %1571 = vmatpush1.bf16.msra.mxu0 0
        %1572 = vmatprep.subr.bf16.mxu0 0
        %1573 = vmatpush1.bf16.msra.mxu0 0
        %1574 = vmatprep.subr.bf16.mxu0 0
        %1575 = vmatpush1.bf16.msra.mxu0 0
        %1576 = vmatprep.subr.bf16.mxu0 0
        %1577 = vmatpush1.bf16.msra.mxu0 0
        %1578 = vmatprep.subr.bf16.mxu0 0
        %1579 = vmatpush1.bf16.msra.mxu0 0
        %1580 = vmatprep.subr.bf16.mxu0 0
        %1581 = vmatpush1.bf16.msra.mxu0 0
        %1582 = vmatprep.subr.bf16.mxu0 0
        %1583 = vmatpush1.bf16.msra.mxu0 0
        %1584 = vmatprep.subr.bf16.mxu0 0
        %1585 = vmatpush1.bf16.msra.mxu0 0
        %1586 = vmatprep.subr.bf16.mxu0 0
        %1587 = vmatpush1.bf16.msra.mxu0 0
        %1588 = vmatprep.subr.bf16.mxu0 0
        %1589 = vmatpush1.bf16.msra.mxu0 0
        %1590 = vmatprep.subr.bf16.mxu0 0
        %1591 = vmatpush1.bf16.msra.mxu0 0
        %1592 = vmatprep.subr.bf16.mxu0 0
        %1593 = vmatpush1.bf16.msra.mxu0 0
        %1594 = vmatprep.subr.bf16.mxu0 0
        %1595 = vmatpush1.bf16.msra.mxu0 0
        %1596 = vmatprep.subr.bf16.mxu0 0
        %1597 = vmatpush1.bf16.msra.mxu0 0
        %1598 = vmatprep.subr.bf16.mxu0 0
        %1599 = vmatpush1.bf16.msra.mxu0 0
        %1600 = vmatprep.mubr.bf16.mxu0 0
        %1601 = vmatmul.mubr.bf16.gmra.mrb[0].mxu0 %v1563
        %v1602 = vpop.f32.mrb[0].mxu0
        %v1603 = vadd.f32 0.0, %v1602
        %v1604 = vpop.f32.mrb[0].mxu0
        %v1605 = vpop.f32.mrb[0].mxu0
        %v1606 = vpop.f32.mrb[0].mxu0
        %1607 = vdwg.mxu0
        %v1608 = vpack.c.bf16 %v1603, %v1603
        %s1609 = scalar_lea.vmem %s4, 12
        %v1610 = vld [vmem:[%s1609] sm:$0xf]
        %v1612 = vsel %vm449, %v1608, 0
        %v1615 = vsel %vm511, %v1610, 0
        %1617 = vmatprep.subr.bf16.mxu0 0
        %1618 = vmatpush1.bf16.msra.mxu0 %v1615
        %1619 = vmatprep.subr.bf16.mxu0 0
        %1620 = vmatpush1.bf16.msra.mxu0 0
        %1621 = vmatprep.subr.bf16.mxu0 0
        %1622 = vmatpush1.bf16.msra.mxu0 0
        %1623 = vmatprep.subr.bf16.mxu0 0
        %1624 = vmatpush1.bf16.msra.mxu0 0
        %1625 = vmatprep.subr.bf16.mxu0 0
        %1626 = vmatpush1.bf16.msra.mxu0 0
        %1627 = vmatprep.subr.bf16.mxu0 0
        %1628 = vmatpush1.bf16.msra.mxu0 0
        %1629 = vmatprep.subr.bf16.mxu0 0
        %1630 = vmatpush1.bf16.msra.mxu0 0
        %1631 = vmatprep.subr.bf16.mxu0 0
        %1632 = vmatpush1.bf16.msra.mxu0 0
        %1633 = vmatprep.subr.bf16.mxu0 0
        %1634 = vmatpush1.bf16.msra.mxu0 0
        %1635 = vmatprep.subr.bf16.mxu0 0
        %1636 = vmatpush1.bf16.msra.mxu0 0
        %1637 = vmatprep.subr.bf16.mxu0 0
        %1638 = vmatpush1.bf16.msra.mxu0 0
        %1639 = vmatprep.subr.bf16.mxu0 0
        %1640 = vmatpush1.bf16.msra.mxu0 0
        %1641 = vmatprep.subr.bf16.mxu0 0
        %1642 = vmatpush1.bf16.msra.mxu0 0
        %1643 = vmatprep.subr.bf16.mxu0 0
        %1644 = vmatpush1.bf16.msra.mxu0 0
        %1645 = vmatprep.subr.bf16.mxu0 0
        %1646 = vmatpush1.bf16.msra.mxu0 0
        %1647 = vmatprep.subr.bf16.mxu0 0
        %1648 = vmatpush1.bf16.msra.mxu0 0
        %1649 = vmatprep.mubr.bf16.mxu0 0
        %1650 = vmatmul.mubr.bf16.gmra.mrb[0].mxu0 %v1612
        %v1651 = vpop.f32.mrb[0].mxu0
        %v1652 = vadd.f32 0.0, %v1651
        %v1653 = vpop.f32.mrb[0].mxu0
        %v1654 = vpop.f32.mrb[0].mxu0
        %v1655 = vpop.f32.mrb[0].mxu0
        %1656 = vdwg.mxu0
        %v1657 = vadd.f32 %v1305, %v1652
        %s1658 = scalar_lea.vmem %s1, 96
        %v1659 = vld [vmem:[%s1658] sm:$0xf]
        %v1660 = vld [vmem:[%s1658 + $0x4] sm:$0xf]
        %v1661 = vld [vmem:[%s1658 + $0x8] sm:$0xf]
        %v1662 = vld [vmem:[%s1658 + $0xc] sm:$0xf]
        %v1663 = vld [vmem:[%s1658 + $0x10] sm:$0xf]
        %v1664 = vld [vmem:[%s1658 + $0x14] sm:$0xf]
        %s1665 = scalar_lea.vmem %s2, 96
        %v1666 = vld [vmem:[%s1665] sm:$0xf]
        %v1667 = vld [vmem:[%s1665 + $0x4] sm:$0xf]
        %v1668 = vld [vmem:[%s1665 + $0x8] sm:$0xf]
        %v1669 = vld [vmem:[%s1665 + $0xc] sm:$0xf]
        %v1670 = vld [vmem:[%s1665 + $0x10] sm:$0xf]
        %v1671 = vld [vmem:[%s1665 + $0x14] sm:$0xf]
        %s1672 = scalar_lea.vmem %s3, 96
        %v1673 = vld [vmem:[%s1672] sm:$0xf]
        %v1674 = vld [vmem:[%s1672 + $0x4] sm:$0xf]
        %v1675 = vld [vmem:[%s1672 + $0x8] sm:$0xf]
        %v1676 = vld [vmem:[%s1672 + $0xc] sm:$0xf]
        %v1677 = vld [vmem:[%s1672 + $0x10] sm:$0xf]
        %v1678 = vld [vmem:[%s1672 + $0x14] sm:$0xf]
        %v1685 = vunpack.c.l.b16 %v1659
        %v1686 = vunpack.c.l.b16 %v1660
        %v1687 = vunpack.c.l.b16 %v1661
        %v1688 = vunpack.c.l.b16 %v1662
        %v1689 = vunpack.c.l.b16 %v1663
        %v1690 = vunpack.c.l.b16 %v1664
        %v1691 = vpack.c.b16 %v1686, %v1685
        %v1692 = vpack.c.b16 %v1688, %v1687
        %v1693 = vpack.c.b16 %v1690, %v1689
        %1697 = vmatprep.subr.bf16.mxu0 0
        %1698 = vmatpush1.bf16.msra.mxu0 %v1691
        %1699 = vmatprep.subr.bf16.mxu0 0
        %1700 = vmatpush1.bf16.msra.mxu0 %v1692
        %1701 = vmatprep.subr.bf16.mxu0 0
        %1702 = vmatpush1.bf16.msra.mxu0 %v1693
        %1703 = vmatprep.subr.bf16.mxu0 0
        %1704 = vmatpush1.bf16.msra.mxu0 0
        %1705 = vmatprep.subr.bf16.mxu0 0
        %1706 = vmatpush1.bf16.msra.mxu0 0
        %1707 = vmatprep.subr.bf16.mxu0 0
        %1708 = vmatpush1.bf16.msra.mxu0 0
        %1709 = vmatprep.subr.bf16.mxu0 0
        %1710 = vmatpush1.bf16.msra.mxu0 0
        %1711 = vmatprep.subr.bf16.mxu0 0
        %1712 = vmatpush1.bf16.msra.mxu0 0
        %1713 = vmatprep.subr.bf16.mxu0 0
        %1714 = vmatpush1.bf16.msra.mxu0 0
        %1715 = vmatprep.subr.bf16.mxu0 0
        %1716 = vmatpush1.bf16.msra.mxu0 0
        %1717 = vmatprep.subr.bf16.mxu0 0
        %1718 = vmatpush1.bf16.msra.mxu0 0
        %1719 = vmatprep.subr.bf16.mxu0 0
        %1720 = vmatpush1.bf16.msra.mxu0 0
        %1721 = vmatprep.subr.bf16.mxu0 0
        %1722 = vmatpush1.bf16.msra.mxu0 0
        %1723 = vmatprep.subr.bf16.mxu0 0
        %1724 = vmatpush1.bf16.msra.mxu0 0
        %1725 = vmatprep.subr.bf16.mxu0 0
        %1726 = vmatpush1.bf16.msra.mxu0 0
        %1727 = vmatprep.subr.bf16.mxu0 0
        %1728 = vmatpush1.bf16.msra.mxu0 0
        %1729 = vmatprep.mubr.bf16.mxu0 0
        %1730 = vmatmul.mubr.bf16.gmra.mrb[0].mxu0 %v288
        %v1731 = vpop.f32.mrb[0].mxu0
        %v1732 = vadd.f32 0.0, %v1731
        %v1733 = vpop.f32.mrb[0].mxu0
        %v1734 = vpop.f32.mrb[0].mxu0
        %v1735 = vpop.f32.mrb[0].mxu0
        %1736 = vdwg.mxu0
        %v1743 = vunpack.c.l.b16 %v1666
        %v1744 = vunpack.c.l.b16 %v1667
        %v1745 = vunpack.c.l.b16 %v1668
        %v1746 = vunpack.c.l.b16 %v1669
        %v1747 = vunpack.c.l.b16 %v1670
        %v1748 = vunpack.c.l.b16 %v1671
        %v1749 = vpack.c.b16 %v1744, %v1743
        %v1750 = vpack.c.b16 %v1746, %v1745
        %v1751 = vpack.c.b16 %v1748, %v1747
        %1755 = vmatprep.subr.bf16.mxu0 0
        %1756 = vmatpush1.bf16.msra.mxu0 %v1749
        %1757 = vmatprep.subr.bf16.mxu0 0
        %1758 = vmatpush1.bf16.msra.mxu0 %v1750
        %1759 = vmatprep.subr.bf16.mxu0 0
        %1760 = vmatpush1.bf16.msra.mxu0 %v1751
        %1761 = vmatprep.subr.bf16.mxu0 0
        %1762 = vmatpush1.bf16.msra.mxu0 0
        %1763 = vmatprep.subr.bf16.mxu0 0
        %1764 = vmatpush1.bf16.msra.mxu0 0
        %1765 = vmatprep.subr.bf16.mxu0 0
        %1766 = vmatpush1.bf16.msra.mxu0 0
        %1767 = vmatprep.subr.bf16.mxu0 0
        %1768 = vmatpush1.bf16.msra.mxu0 0
        %1769 = vmatprep.subr.bf16.mxu0 0
        %1770 = vmatpush1.bf16.msra.mxu0 0
        %1771 = vmatprep.subr.bf16.mxu0 0
        %1772 = vmatpush1.bf16.msra.mxu0 0
        %1773 = vmatprep.subr.bf16.mxu0 0
        %1774 = vmatpush1.bf16.msra.mxu0 0
        %1775 = vmatprep.subr.bf16.mxu0 0
        %1776 = vmatpush1.bf16.msra.mxu0 0
        %1777 = vmatprep.subr.bf16.mxu0 0
        %1778 = vmatpush1.bf16.msra.mxu0 0
        %1779 = vmatprep.subr.bf16.mxu0 0
        %1780 = vmatpush1.bf16.msra.mxu0 0
        %1781 = vmatprep.subr.bf16.mxu0 0
        %1782 = vmatpush1.bf16.msra.mxu0 0
        %1783 = vmatprep.subr.bf16.mxu0 0
        %1784 = vmatpush1.bf16.msra.mxu0 0
        %1785 = vmatprep.subr.bf16.mxu0 0
        %1786 = vmatpush1.bf16.msra.mxu0 0
        %1787 = vmatprep.mubr.bf16.mxu0 0
        %1788 = vmatmul.mubr.bf16.gmra.mrb[0].mxu0 %v288
        %v1789 = vpop.f32.mrb[0].mxu0
        %v1790 = vadd.f32 0.0, %v1789
        %v1791 = vpop.f32.mrb[0].mxu0
        %v1792 = vpop.f32.mrb[0].mxu0
        %v1793 = vpop.f32.mrb[0].mxu0
        %1794 = vdwg.mxu0
        %v1801 = vunpack.c.l.b16 %v1673
        %v1802 = vunpack.c.l.b16 %v1674
        %v1803 = vunpack.c.l.b16 %v1675
        %v1804 = vunpack.c.l.b16 %v1676
        %v1805 = vunpack.c.l.b16 %v1677
        %v1806 = vunpack.c.l.b16 %v1678
        %v1807 = vpack.c.b16 %v1802, %v1801
        %v1808 = vpack.c.b16 %v1804, %v1803
        %v1809 = vpack.c.b16 %v1806, %v1805
        %1813 = vmatprep.subr.bf16.mxu0 0
        %1814 = vmatpush1.bf16.msra.mxu0 %v1807
        %1815 = vmatprep.subr.bf16.mxu0 0
        %1816 = vmatpush1.bf16.msra.mxu0 %v1808
        %1817 = vmatprep.subr.bf16.mxu0 0
        %1818 = vmatpush1.bf16.msra.mxu0 %v1809
        %1819 = vmatprep.subr.bf16.mxu0 0
        %1820 = vmatpush1.bf16.msra.mxu0 0
        %1821 = vmatprep.subr.bf16.mxu0 0
        %1822 = vmatpush1.bf16.msra.mxu0 0
        %1823 = vmatprep.subr.bf16.mxu0 0
        %1824 = vmatpush1.bf16.msra.mxu0 0
        %1825 = vmatprep.subr.bf16.mxu0 0
        %1826 = vmatpush1.bf16.msra.mxu0 0
        %1827 = vmatprep.subr.bf16.mxu0 0
        %1828 = vmatpush1.bf16.msra.mxu0 0
        %1829 = vmatprep.subr.bf16.mxu0 0
        %1830 = vmatpush1.bf16.msra.mxu0 0
        %1831 = vmatprep.subr.bf16.mxu0 0
        %1832 = vmatpush1.bf16.msra.mxu0 0
        %1833 = vmatprep.subr.bf16.mxu0 0
        %1834 = vmatpush1.bf16.msra.mxu0 0
        %1835 = vmatprep.subr.bf16.mxu0 0
        %1836 = vmatpush1.bf16.msra.mxu0 0
        %1837 = vmatprep.subr.bf16.mxu0 0
        %1838 = vmatpush1.bf16.msra.mxu0 0
        %1839 = vmatprep.subr.bf16.mxu0 0
        %1840 = vmatpush1.bf16.msra.mxu0 0
        %1841 = vmatprep.subr.bf16.mxu0 0
        %1842 = vmatpush1.bf16.msra.mxu0 0
        %1843 = vmatprep.subr.bf16.mxu0 0
        %1844 = vmatpush1.bf16.msra.mxu0 0
        %1845 = vmatprep.mubr.bf16.mxu0 0
        %1846 = vmatmul.mubr.bf16.gmra.mrb[0].mxu0 %v288
        %v1847 = vpop.f32.mrb[0].mxu0
        %v1848 = vadd.f32 0.0, %v1847
        %v1849 = vpop.f32.mrb[0].mxu0
        %v1850 = vpop.f32.mrb[0].mxu0
        %v1851 = vpop.f32.mrb[0].mxu0
        %1852 = vdwg.mxu0
        %v1853 = vpack.c.bf16 %v1732, %v1732
        %v1854 = vpack.c.bf16 %v1790, %v1790
        %v1855 = vpack.c.bf16 %v1848, %v1848
        %v1857 = vsel %vm449, %v1853, 0
        %v1860 = vsel %vm449, %v1854, 0
        %1862 = vmatprep.subr.bf16.mxu0 0
        %1863 = vmatpush1.bf16.xpose.msra.mxu0 %v1860
        %1864 = vmatprep.subr.bf16.mxu0 0
        %1865 = vmatpush1.bf16.xpose.msra.mxu0 0
        %1866 = vmatprep.subr.bf16.mxu0 0
        %1867 = vmatpush1.bf16.xpose.msra.mxu0 0
        %1868 = vmatprep.subr.bf16.mxu0 0
        %1869 = vmatpush1.bf16.xpose.msra.mxu0 0
        %1870 = vmatprep.subr.bf16.mxu0 0
        %1871 = vmatpush1.bf16.xpose.msra.mxu0 0
        %1872 = vmatprep.subr.bf16.mxu0 0
        %1873 = vmatpush1.bf16.xpose.msra.mxu0 0
        %1874 = vmatprep.subr.bf16.mxu0 0
        %1875 = vmatpush1.bf16.xpose.msra.mxu0 0
        %1876 = vmatprep.subr.bf16.mxu0 0
        %1877 = vmatpush1.bf16.xpose.msra.mxu0 0
        %1878 = vmatprep.subr.bf16.mxu0 0
        %1879 = vmatpush1.bf16.xpose.msra.mxu0 0
        %1880 = vmatprep.subr.bf16.mxu0 0
        %1881 = vmatpush1.bf16.xpose.msra.mxu0 0
        %1882 = vmatprep.subr.bf16.mxu0 0
        %1883 = vmatpush1.bf16.xpose.msra.mxu0 0
        %1884 = vmatprep.subr.bf16.mxu0 0
        %1885 = vmatpush1.bf16.xpose.msra.mxu0 0
        %1886 = vmatprep.subr.bf16.mxu0 0
        %1887 = vmatpush1.bf16.xpose.msra.mxu0 0
        %1888 = vmatprep.subr.bf16.mxu0 0
        %1889 = vmatpush1.bf16.xpose.msra.mxu0 0
        %1890 = vmatprep.subr.bf16.mxu0 0
        %1891 = vmatpush1.bf16.xpose.msra.mxu0 0
        %1892 = vmatprep.subr.bf16.mxu0 0
        %1893 = vmatpush1.bf16.xpose.msra.mxu0 0
        %1894 = vmatprep.mubr.bf16.mxu0 0
        %1895 = vmatmul.mubr.bf16.gmra.mrb[0].mxu0 %v1857
        %v1896 = vpop.f32.mrb[0].mxu0
        %v1897 = vadd.f32 0.0, %v1896
        %v1898 = vpop.f32.mrb[0].mxu0
        %v1899 = vpop.f32.mrb[0].mxu0
        %v1900 = vpop.f32.mrb[0].mxu0
        %1901 = vdwg.mxu0
        %v1902 = vsel %vm449, %v1897, -inf
        %1903 = vmax.xlane.f32.xlu0 %v1902
        %v1904 = vpop.xlane.xlu0 %1903
        %v1905 = vsub.f32 %v1897, %v1904
        %v1906 = vmul.f32 %v1905, 1.442695
        %v1907 = vpow.pop %v1906
        %v1908 = vsel %vm449, %v1907, 0.0
        %1909 = vadd.xlane.f32.xlu0 %v1908
        %v1910 = vpop.xlane.xlu0 %1909
        %v1911 = vrcp.pop %v1910
        %v1912 = vmul.f32 %v1907, %v1911
        %v1913 = vpack.c.bf16 %v1912, %v1912
        %v1915 = vsel %vm449, %v1913, 0
        %v1918 = vsel %vm511, %v1855, 0
        %1920 = vmatprep.subr.bf16.mxu0 0
        %1921 = vmatpush1.bf16.msra.mxu0 %v1918
        %1922 = vmatprep.subr.bf16.mxu0 0
        %1923 = vmatpush1.bf16.msra.mxu0 0
        %1924 = vmatprep.subr.bf16.mxu0 0
        %1925 = vmatpush1.bf16.msra.mxu0 0
        %1926 = vmatprep.subr.bf16.mxu0 0
        %1927 = vmatpush1.bf16.msra.mxu0 0
        %1928 = vmatprep.subr.bf16.mxu0 0
        %1929 = vmatpush1.bf16.msra.mxu0 0
        %1930 = vmatprep.subr.bf16.mxu0 0
        %1931 = vmatpush1.bf16.msra.mxu0 0
        %1932 = vmatprep.subr.bf16.mxu0 0
        %1933 = vmatpush1.bf16.msra.mxu0 0
        %1934 = vmatprep.subr.bf16.mxu0 0
        %1935 = vmatpush1.bf16.msra.mxu0 0
        %1936 = vmatprep.subr.bf16.mxu0 0
        %1937 = vmatpush1.bf16.msra.mxu0 0
        %1938 = vmatprep.subr.bf16.mxu0 0
        %1939 = vmatpush1.bf16.msra.mxu0 0
        %1940 = vmatprep.subr.bf16.mxu0 0
        %1941 = vmatpush1.bf16.msra.mxu0 0
        %1942 = vmatprep.subr.bf16.mxu0 0
        %1943 = vmatpush1.bf16.msra.mxu0 0
        %1944 = vmatprep.subr.bf16.mxu0 0
        %1945 = vmatpush1.bf16.msra.mxu0 0
        %1946 = vmatprep.subr.bf16.mxu0 0
        %1947 = vmatpush1.bf16.msra.mxu0 0
        %1948 = vmatprep.subr.bf16.mxu0 0
        %1949 = vmatpush1.bf16.msra.mxu0 0
        %1950 = vmatprep.subr.bf16.mxu0 0
        %1951 = vmatpush1.bf16.msra.mxu0 0
        %1952 = vmatprep.mubr.bf16.mxu0 0
        %1953 = vmatmul.mubr.bf16.gmra.mrb[0].mxu0 %v1915
        %v1954 = vpop.f32.mrb[0].mxu0
        %v1955 = vadd.f32 0.0, %v1954
        %v1956 = vpop.f32.mrb[0].mxu0
        %v1957 = vpop.f32.mrb[0].mxu0
        %v1958 = vpop.f32.mrb[0].mxu0
        %1959 = vdwg.mxu0
        %v1960 = vpack.c.bf16 %v1955, %v1955
        %s1961 = scalar_lea.vmem %s4, 16
        %v1962 = vld [vmem:[%s1961] sm:$0xf]
        %v1964 = vsel %vm449, %v1960, 0
        %v1967 = vsel %vm511, %v1962, 0
        %1969 = vmatprep.subr.bf16.mxu0 0
        %1970 = vmatpush1.bf16.msra.mxu0 %v1967
        %1971 = vmatprep.subr.bf16.mxu0 0
        %1972 = vmatpush1.bf16.msra.mxu0 0
        %1973 = vmatprep.subr.bf16.mxu0 0
        %1974 = vmatpush1.bf16.msra.mxu0 0
        %1975 = vmatprep.subr.bf16.mxu0 0
        %1976 = vmatpush1.bf16.msra.mxu0 0
        %1977 = vmatprep.subr.bf16.mxu0 0
        %1978 = vmatpush1.bf16.msra.mxu0 0
        %1979 = vmatprep.subr.bf16.mxu0 0
        %1980 = vmatpush1.bf16.msra.mxu0 0
        %1981 = vmatprep.subr.bf16.mxu0 0
        %1982 = vmatpush1.bf16.msra.mxu0 0
        %1983 = vmatprep.subr.bf16.mxu0 0
        %1984 = vmatpush1.bf16.msra.mxu0 0
        %1985 = vmatprep.subr.bf16.mxu0 0
        %1986 = vmatpush1.bf16.msra.mxu0 0
        %1987 = vmatprep.subr.bf16.mxu0 0
        %1988 = vmatpush1.bf16.msra.mxu0 0
        %1989 = vmatprep.subr.bf16.mxu0 0
        %1990 = vmatpush1.bf16.msra.mxu0 0
        %1991 = vmatprep.subr.bf16.mxu0 0
        %1992 = vmatpush1.bf16.msra.mxu0 0
        %1993 = vmatprep.subr.bf16.mxu0 0
        %1994 = vmatpush1.bf16.msra.mxu0 0
        %1995 = vmatprep.subr.bf16.mxu0 0
        %1996 = vmatpush1.bf16.msra.mxu0 0
        %1997 = vmatprep.subr.bf16.mxu0 0
        %1998 = vmatpush1.bf16.msra.mxu0 0
        %1999 = vmatprep.subr.bf16.mxu0 0
        %2000 = vmatpush1.bf16.msra.mxu0 0
        %2001 = vmatprep.mubr.bf16.mxu0 0
        %2002 = vmatmul.mubr.bf16.gmra.mrb[0].mxu0 %v1964
        %v2003 = vpop.f32.mrb[0].mxu0
        %v2004 = vadd.f32 0.0, %v2003
        %v2005 = vpop.f32.mrb[0].mxu0
        %v2006 = vpop.f32.mrb[0].mxu0
        %v2007 = vpop.f32.mrb[0].mxu0
        %2008 = vdwg.mxu0
        %v2009 = vadd.f32 %v1657, %v2004
        %s2010 = scalar_lea.vmem %s1, 120
        %v2011 = vld [vmem:[%s2010] sm:$0xf]
        %v2012 = vld [vmem:[%s2010 + $0x4] sm:$0xf]
        %v2013 = vld [vmem:[%s2010 + $0x8] sm:$0xf]
        %v2014 = vld [vmem:[%s2010 + $0xc] sm:$0xf]
        %v2015 = vld [vmem:[%s2010 + $0x10] sm:$0xf]
        %v2016 = vld [vmem:[%s2010 + $0x14] sm:$0xf]
        %s2017 = scalar_lea.vmem %s2, 120
        %v2018 = vld [vmem:[%s2017] sm:$0xf]
        %v2019 = vld [vmem:[%s2017 + $0x4] sm:$0xf]
        %v2020 = vld [vmem:[%s2017 + $0x8] sm:$0xf]
        %v2021 = vld [vmem:[%s2017 + $0xc] sm:$0xf]
        %v2022 = vld [vmem:[%s2017 + $0x10] sm:$0xf]
        %v2023 = vld [vmem:[%s2017 + $0x14] sm:$0xf]
        %s2024 = scalar_lea.vmem %s3, 120
        %v2025 = vld [vmem:[%s2024] sm:$0xf]
        %v2026 = vld [vmem:[%s2024 + $0x4] sm:$0xf]
        %v2027 = vld [vmem:[%s2024 + $0x8] sm:$0xf]
        %v2028 = vld [vmem:[%s2024 + $0xc] sm:$0xf]
        %v2029 = vld [vmem:[%s2024 + $0x10] sm:$0xf]
        %v2030 = vld [vmem:[%s2024 + $0x14] sm:$0xf]
        %v2037 = vunpack.c.l.b16 %v2011
        %v2038 = vunpack.c.l.b16 %v2012
        %v2039 = vunpack.c.l.b16 %v2013
        %v2040 = vunpack.c.l.b16 %v2014
        %v2041 = vunpack.c.l.b16 %v2015
        %v2042 = vunpack.c.l.b16 %v2016
        %v2043 = vpack.c.b16 %v2038, %v2037
        %v2044 = vpack.c.b16 %v2040, %v2039
        %v2045 = vpack.c.b16 %v2042, %v2041
        %2049 = vmatprep.subr.bf16.mxu0 0
        %2050 = vmatpush1.bf16.msra.mxu0 %v2043
        %2051 = vmatprep.subr.bf16.mxu0 0
        %2052 = vmatpush1.bf16.msra.mxu0 %v2044
        %2053 = vmatprep.subr.bf16.mxu0 0
        %2054 = vmatpush1.bf16.msra.mxu0 %v2045
        %2055 = vmatprep.subr.bf16.mxu0 0
        %2056 = vmatpush1.bf16.msra.mxu0 0
        %2057 = vmatprep.subr.bf16.mxu0 0
        %2058 = vmatpush1.bf16.msra.mxu0 0
        %2059 = vmatprep.subr.bf16.mxu0 0
        %2060 = vmatpush1.bf16.msra.mxu0 0
        %2061 = vmatprep.subr.bf16.mxu0 0
        %2062 = vmatpush1.bf16.msra.mxu0 0
        %2063 = vmatprep.subr.bf16.mxu0 0
        %2064 = vmatpush1.bf16.msra.mxu0 0
        %2065 = vmatprep.subr.bf16.mxu0 0
        %2066 = vmatpush1.bf16.msra.mxu0 0
        %2067 = vmatprep.subr.bf16.mxu0 0
        %2068 = vmatpush1.bf16.msra.mxu0 0
        %2069 = vmatprep.subr.bf16.mxu0 0
        %2070 = vmatpush1.bf16.msra.mxu0 0
        %2071 = vmatprep.subr.bf16.mxu0 0
        %2072 = vmatpush1.bf16.msra.mxu0 0
        %2073 = vmatprep.subr.bf16.mxu0 0
        %2074 = vmatpush1.bf16.msra.mxu0 0
        %2075 = vmatprep.subr.bf16.mxu0 0
        %2076 = vmatpush1.bf16.msra.mxu0 0
        %2077 = vmatprep.subr.bf16.mxu0 0
        %2078 = vmatpush1.bf16.msra.mxu0 0
        %2079 = vmatprep.subr.bf16.mxu0 0
        %2080 = vmatpush1.bf16.msra.mxu0 0
        %2081 = vmatprep.mubr.bf16.mxu0 0
        %2082 = vmatmul.mubr.bf16.gmra.mrb[0].mxu0 %v288
        %v2083 = vpop.f32.mrb[0].mxu0
        %v2084 = vadd.f32 0.0, %v2083
        %v2085 = vpop.f32.mrb[0].mxu0
        %v2086 = vpop.f32.mrb[0].mxu0
        %v2087 = vpop.f32.mrb[0].mxu0
        %2088 = vdwg.mxu0
        %v2095 = vunpack.c.l.b16 %v2018
        %v2096 = vunpack.c.l.b16 %v2019
        %v2097 = vunpack.c.l.b16 %v2020
        %v2098 = vunpack.c.l.b16 %v2021
        %v2099 = vunpack.c.l.b16 %v2022
        %v2100 = vunpack.c.l.b16 %v2023
        %v2101 = vpack.c.b16 %v2096, %v2095
        %v2102 = vpack.c.b16 %v2098, %v2097
        %v2103 = vpack.c.b16 %v2100, %v2099
        %2107 = vmatprep.subr.bf16.mxu0 0
        %2108 = vmatpush1.bf16.msra.mxu0 %v2101
        %2109 = vmatprep.subr.bf16.mxu0 0
        %2110 = vmatpush1.bf16.msra.mxu0 %v2102
        %2111 = vmatprep.subr.bf16.mxu0 0
        %2112 = vmatpush1.bf16.msra.mxu0 %v2103
        %2113 = vmatprep.subr.bf16.mxu0 0
        %2114 = vmatpush1.bf16.msra.mxu0 0
        %2115 = vmatprep.subr.bf16.mxu0 0
        %2116 = vmatpush1.bf16.msra.mxu0 0
        %2117 = vmatprep.subr.bf16.mxu0 0
        %2118 = vmatpush1.bf16.msra.mxu0 0
        %2119 = vmatprep.subr.bf16.mxu0 0
        %2120 = vmatpush1.bf16.msra.mxu0 0
        %2121 = vmatprep.subr.bf16.mxu0 0
        %2122 = vmatpush1.bf16.msra.mxu0 0
        %2123 = vmatprep.subr.bf16.mxu0 0
        %2124 = vmatpush1.bf16.msra.mxu0 0
        %2125 = vmatprep.subr.bf16.mxu0 0
        %2126 = vmatpush1.bf16.msra.mxu0 0
        %2127 = vmatprep.subr.bf16.mxu0 0
        %2128 = vmatpush1.bf16.msra.mxu0 0
        %2129 = vmatprep.subr.bf16.mxu0 0
        %2130 = vmatpush1.bf16.msra.mxu0 0
        %2131 = vmatprep.subr.bf16.mxu0 0
        %2132 = vmatpush1.bf16.msra.mxu0 0
        %2133 = vmatprep.subr.bf16.mxu0 0
        %2134 = vmatpush1.bf16.msra.mxu0 0
        %2135 = vmatprep.subr.bf16.mxu0 0
        %2136 = vmatpush1.bf16.msra.mxu0 0
        %2137 = vmatprep.subr.bf16.mxu0 0
        %2138 = vmatpush1.bf16.msra.mxu0 0
        %2139 = vmatprep.mubr.bf16.mxu0 0
        %2140 = vmatmul.mubr.bf16.gmra.mrb[0].mxu0 %v288
        %v2141 = vpop.f32.mrb[0].mxu0
        %v2142 = vadd.f32 0.0, %v2141
        %v2143 = vpop.f32.mrb[0].mxu0
        %v2144 = vpop.f32.mrb[0].mxu0
        %v2145 = vpop.f32.mrb[0].mxu0
        %2146 = vdwg.mxu0
        %v2153 = vunpack.c.l.b16 %v2025
        %v2154 = vunpack.c.l.b16 %v2026
        %v2155 = vunpack.c.l.b16 %v2027
        %v2156 = vunpack.c.l.b16 %v2028
        %v2157 = vunpack.c.l.b16 %v2029
        %v2158 = vunpack.c.l.b16 %v2030
        %v2159 = vpack.c.b16 %v2154, %v2153
        %v2160 = vpack.c.b16 %v2156, %v2155
        %v2161 = vpack.c.b16 %v2158, %v2157
        %2165 = vmatprep.subr.bf16.mxu0 0
        %2166 = vmatpush1.bf16.msra.mxu0 %v2159
        %2167 = vmatprep.subr.bf16.mxu0 0
        %2168 = vmatpush1.bf16.msra.mxu0 %v2160
        %2169 = vmatprep.subr.bf16.mxu0 0
        %2170 = vmatpush1.bf16.msra.mxu0 %v2161
        %2171 = vmatprep.subr.bf16.mxu0 0
        %2172 = vmatpush1.bf16.msra.mxu0 0
        %2173 = vmatprep.subr.bf16.mxu0 0
        %2174 = vmatpush1.bf16.msra.mxu0 0
        %2175 = vmatprep.subr.bf16.mxu0 0
        %2176 = vmatpush1.bf16.msra.mxu0 0
        %2177 = vmatprep.subr.bf16.mxu0 0
        %2178 = vmatpush1.bf16.msra.mxu0 0
        %2179 = vmatprep.subr.bf16.mxu0 0
        %2180 = vmatpush1.bf16.msra.mxu0 0
        %2181 = vmatprep.subr.bf16.mxu0 0
        %2182 = vmatpush1.bf16.msra.mxu0 0
        %2183 = vmatprep.subr.bf16.mxu0 0
        %2184 = vmatpush1.bf16.msra.mxu0 0
        %2185 = vmatprep.subr.bf16.mxu0 0
        %2186 = vmatpush1.bf16.msra.mxu0 0
        %2187 = vmatprep.subr.bf16.mxu0 0
        %2188 = vmatpush1.bf16.msra.mxu0 0
        %2189 = vmatprep.subr.bf16.mxu0 0
        %2190 = vmatpush1.bf16.msra.mxu0 0
        %2191 = vmatprep.subr.bf16.mxu0 0
        %2192 = vmatpush1.bf16.msra.mxu0 0
        %2193 = vmatprep.subr.bf16.mxu0 0
        %2194 = vmatpush1.bf16.msra.mxu0 0
        %2195 = vmatprep.subr.bf16.mxu0 0
        %2196 = vmatpush1.bf16.msra.mxu0 0
        %2197 = vmatprep.mubr.bf16.mxu0 0
        %2198 = vmatmul.mubr.bf16.gmra.mrb[0].mxu0 %v288
        %v2199 = vpop.f32.mrb[0].mxu0
        %v2200 = vadd.f32 0.0, %v2199
        %v2201 = vpop.f32.mrb[0].mxu0
        %v2202 = vpop.f32.mrb[0].mxu0
        %v2203 = vpop.f32.mrb[0].mxu0
        %2204 = vdwg.mxu0
        %v2205 = vpack.c.bf16 %v2084, %v2084
        %v2206 = vpack.c.bf16 %v2142, %v2142
        %v2207 = vpack.c.bf16 %v2200, %v2200
        %v2209 = vsel %vm449, %v2205, 0
        %v2212 = vsel %vm449, %v2206, 0
        %2214 = vmatprep.subr.bf16.mxu0 0
        %2215 = vmatpush1.bf16.xpose.msra.mxu0 %v2212
        %2216 = vmatprep.subr.bf16.mxu0 0
        %2217 = vmatpush1.bf16.xpose.msra.mxu0 0
        %2218 = vmatprep.subr.bf16.mxu0 0
        %2219 = vmatpush1.bf16.xpose.msra.mxu0 0
        %2220 = vmatprep.subr.bf16.mxu0 0
        %2221 = vmatpush1.bf16.xpose.msra.mxu0 0
        %2222 = vmatprep.subr.bf16.mxu0 0
        %2223 = vmatpush1.bf16.xpose.msra.mxu0 0
        %2224 = vmatprep.subr.bf16.mxu0 0
        %2225 = vmatpush1.bf16.xpose.msra.mxu0 0
        %2226 = vmatprep.subr.bf16.mxu0 0
        %2227 = vmatpush1.bf16.xpose.msra.mxu0 0
        %2228 = vmatprep.subr.bf16.mxu0 0
        %2229 = vmatpush1.bf16.xpose.msra.mxu0 0
        %2230 = vmatprep.subr.bf16.mxu0 0
        %2231 = vmatpush1.bf16.xpose.msra.mxu0 0
        %2232 = vmatprep.subr.bf16.mxu0 0
        %2233 = vmatpush1.bf16.xpose.msra.mxu0 0
        %2234 = vmatprep.subr.bf16.mxu0 0
        %2235 = vmatpush1.bf16.xpose.msra.mxu0 0
        %2236 = vmatprep.subr.bf16.mxu0 0
        %2237 = vmatpush1.bf16.xpose.msra.mxu0 0
        %2238 = vmatprep.subr.bf16.mxu0 0
        %2239 = vmatpush1.bf16.xpose.msra.mxu0 0
        %2240 = vmatprep.subr.bf16.mxu0 0
        %2241 = vmatpush1.bf16.xpose.msra.mxu0 0
        %2242 = vmatprep.subr.bf16.mxu0 0
        %2243 = vmatpush1.bf16.xpose.msra.mxu0 0
        %2244 = vmatprep.subr.bf16.mxu0 0
        %2245 = vmatpush1.bf16.xpose.msra.mxu0 0
        %2246 = vmatprep.mubr.bf16.mxu0 0
        %2247 = vmatmul.mubr.bf16.gmra.mrb[0].mxu0 %v2209
        %v2248 = vpop.f32.mrb[0].mxu0
        %v2249 = vadd.f32 0.0, %v2248
        %v2250 = vpop.f32.mrb[0].mxu0
        %v2251 = vpop.f32.mrb[0].mxu0
        %v2252 = vpop.f32.mrb[0].mxu0
        %2253 = vdwg.mxu0
        %v2254 = vsel %vm449, %v2249, -inf
        %2255 = vmax.xlane.f32.xlu0 %v2254
        %v2256 = vpop.xlane.xlu0 %2255
        %v2257 = vsub.f32 %v2249, %v2256
        %v2258 = vmul.f32 %v2257, 1.442695
        %v2259 = vpow.pop %v2258
        %v2260 = vsel %vm449, %v2259, 0.0
        %2261 = vadd.xlane.f32.xlu0 %v2260
        %v2262 = vpop.xlane.xlu0 %2261
        %v2263 = vrcp.pop %v2262
        %v2264 = vmul.f32 %v2259, %v2263
        %v2265 = vpack.c.bf16 %v2264, %v2264
        %v2267 = vsel %vm449, %v2265, 0
        %v2270 = vsel %vm511, %v2207, 0
        %2272 = vmatprep.subr.bf16.mxu0 0
        %2273 = vmatpush1.bf16.msra.mxu0 %v2270
        %2274 = vmatprep.subr.bf16.mxu0 0
        %2275 = vmatpush1.bf16.msra.mxu0 0
        %2276 = vmatprep.subr.bf16.mxu0 0
        %2277 = vmatpush1.bf16.msra.mxu0 0
        %2278 = vmatprep.subr.bf16.mxu0 0
        %2279 = vmatpush1.bf16.msra.mxu0 0
        %2280 = vmatprep.subr.bf16.mxu0 0
        %2281 = vmatpush1.bf16.msra.mxu0 0
        %2282 = vmatprep.subr.bf16.mxu0 0
        %2283 = vmatpush1.bf16.msra.mxu0 0
        %2284 = vmatprep.subr.bf16.mxu0 0
        %2285 = vmatpush1.bf16.msra.mxu0 0
        %2286 = vmatprep.subr.bf16.mxu0 0
        %2287 = vmatpush1.bf16.msra.mxu0 0
        %2288 = vmatprep.subr.bf16.mxu0 0
        %2289 = vmatpush1.bf16.msra.mxu0 0
        %2290 = vmatprep.subr.bf16.mxu0 0
        %2291 = vmatpush1.bf16.msra.mxu0 0
        %2292 = vmatprep.subr.bf16.mxu0 0
        %2293 = vmatpush1.bf16.msra.mxu0 0
        %2294 = vmatprep.subr.bf16.mxu0 0
        %2295 = vmatpush1.bf16.msra.mxu0 0
        %2296 = vmatprep.subr.bf16.mxu0 0
        %2297 = vmatpush1.bf16.msra.mxu0 0
        %2298 = vmatprep.subr.bf16.mxu0 0
        %2299 = vmatpush1.bf16.msra.mxu0 0
        %2300 = vmatprep.subr.bf16.mxu0 0
        %2301 = vmatpush1.bf16.msra.mxu0 0
        %2302 = vmatprep.subr.bf16.mxu0 0
        %2303 = vmatpush1.bf16.msra.mxu0 0
        %2304 = vmatprep.mubr.bf16.mxu0 0
        %2305 = vmatmul.mubr.bf16.gmra.mrb[0].mxu0 %v2267
        %v2306 = vpop.f32.mrb[0].mxu0
        %v2307 = vadd.f32 0.0, %v2306
        %v2308 = vpop.f32.mrb[0].mxu0
        %v2309 = vpop.f32.mrb[0].mxu0
        %v2310 = vpop.f32.mrb[0].mxu0
        %2311 = vdwg.mxu0
        %v2312 = vpack.c.bf16 %v2307, %v2307
        %s2313 = scalar_lea.vmem %s4, 20
        %v2314 = vld [vmem:[%s2313] sm:$0xf]
        %v2316 = vsel %vm449, %v2312, 0
        %v2319 = vsel %vm511, %v2314, 0
        %2321 = vmatprep.subr.bf16.mxu0 0
        %2322 = vmatpush1.bf16.msra.mxu0 %v2319
        %2323 = vmatprep.subr.bf16.mxu0 0
        %2324 = vmatpush1.bf16.msra.mxu0 0
        %2325 = vmatprep.subr.bf16.mxu0 0
        %2326 = vmatpush1.bf16.msra.mxu0 0
        %2327 = vmatprep.subr.bf16.mxu0 0
        %2328 = vmatpush1.bf16.msra.mxu0 0
        %2329 = vmatprep.subr.bf16.mxu0 0
        %2330 = vmatpush1.bf16.msra.mxu0 0
        %2331 = vmatprep.subr.bf16.mxu0 0
        %2332 = vmatpush1.bf16.msra.mxu0 0
        %2333 = vmatprep.subr.bf16.mxu0 0
        %2334 = vmatpush1.bf16.msra.mxu0 0
        %2335 = vmatprep.subr.bf16.mxu0 0
        %2336 = vmatpush1.bf16.msra.mxu0 0
        %2337 = vmatprep.subr.bf16.mxu0 0
        %2338 = vmatpush1.bf16.msra.mxu0 0
        %2339 = vmatprep.subr.bf16.mxu0 0
        %2340 = vmatpush1.bf16.msra.mxu0 0
        %2341 = vmatprep.subr.bf16.mxu0 0
        %2342 = vmatpush1.bf16.msra.mxu0 0
        %2343 = vmatprep.subr.bf16.mxu0 0
        %2344 = vmatpush1.bf16.msra.mxu0 0
        %2345 = vmatprep.subr.bf16.mxu0 0
        %2346 = vmatpush1.bf16.msra.mxu0 0
        %2347 = vmatprep.subr.bf16.mxu0 0
        %2348 = vmatpush1.bf16.msra.mxu0 0
        %2349 = vmatprep.subr.bf16.mxu0 0
        %2350 = vmatpush1.bf16.msra.mxu0 0
        %2351 = vmatprep.subr.bf16.mxu0 0
        %2352 = vmatpush1.bf16.msra.mxu0 0
        %2353 = vmatprep.mubr.bf16.mxu0 0
        %2354 = vmatmul.mubr.bf16.gmra.mrb[0].mxu0 %v2316
        %v2355 = vpop.f32.mrb[0].mxu0
        %v2356 = vadd.f32 0.0, %v2355
        %v2357 = vpop.f32.mrb[0].mxu0
        %v2358 = vpop.f32.mrb[0].mxu0
        %v2359 = vpop.f32.mrb[0].mxu0
        %2360 = vdwg.mxu0
        %v2361 = vadd.f32 %v2009, %v2356
        %v2362 = vld [vmem:[%s5] sm:$0x1]
        %v2364 = vlaneseq
        %v2365 = vshrl.u32 %v2364, 7
        %v2366 = vsub.s32 0, %v2365
        %v2367 = vrot.slane %v2362, %v2366
        %v2369 = vadd.f32 %v2361, %v2367
        %2370 = vst.msk [vmem:[%s242] sm:$0xff] %vm286, %v2369
        %s2371 = sand.u32 %s159, 1
        %s2372 = scalar_lea.sflag [#allocation3], %s2371
        %s2373 = sand.u32 %s159, 1
        %s2374 = smul.addr %s2373, 8
        %s2375 = scalar_lea.vmem [#allocation2], %s2374
        // Predicated region
        $region45: #{tpu_custom_call.1} parent=43 // pred_check
          %p2376 = pneg %p169
        $region46: #{tpu_custom_call.1} parent=43 // pred_check_branch
          %2378 = sbr.rel (%p2376) target = $region48
        $region47: #{tpu_custom_call.1} parent=43 // pred_region
          %s2380 = ssub.s32 128, 128
          %2381 = vsyncadd %s2372, %s2380
          %s2382 = smul.addr %s20, 128
          %s2383 = scalar_lea.hbm %s6, %s2382
          %s2385 = sshll.u32 %s2375, 4
          %s2386 = int_to_ptr.vmem [resolvable:$true] %s2385
          %2388 = dma.vmem_to_hbm [thread:$0]  %s2386, 128, %s2383, %s2372
        $region48: #{tpu_custom_call.1} parent=43 // pred_fallthru
          _
      $region44: #{tpu_custom_call.1} parent=5 // pred_fallthru
        _
      %p2389 = scmp.le.s32.totalorder 2, %s15
      // Predicated region
      $region49: #{tpu_custom_call.1} parent=5 // pred_check
        %p2390 = pneg %p2389
      $region50: #{tpu_custom_call.1} parent=5 // pred_check_branch
        %2392 = sbr.rel (%p2390) target = $region52
      $region51: #{tpu_custom_call.1} parent=5 // pred_region
        %s2393 = ssub.s32 %s15, 2
        // Predicated region
        $region53: #{tpu_custom_call.1} parent=51 // pred_check
          %p2394 = pneg %p175
        $region54: #{tpu_custom_call.1} parent=51 // pred_check_branch
          %2396 = sbr.rel (%p2394) target = $region56
        $region55: #{tpu_custom_call.1} parent=51 // pred_region
          %s2397 = sand.u32 %s160, 1
          %s2398 = scalar_lea.sflag [#allocation3], %s2397
          %s2399 = sand.u32 %s160, 1
          %s2400 = smul.addr %s2399, 8
          %s2401 = scalar_lea.vmem [#allocation2], %s2400
          %2402 = dma.done %s2398, 128
        $region56: #{tpu_custom_call.1} parent=51 // pred_fallthru
          _
      $region52: #{tpu_custom_call.1} parent=5 // pred_fallthru
        _
    $region6: #{tpu_custom_call.1} parent=1 // loop_footer
      %s19 = sadd.s32 1, %s15
    $region7: #{tpu_custom_call.1} parent=1 // loop_footer_branch
      %14 = sbr.rel target = $region3
    $region8: #{tpu_custom_call.1} parent=1 // loop_exit
      _
    %2403 = vsyncpa [#allocation3], 1
    %s2404 = scalar_lea.sflag [#allocation3], 1
    %2405 = vsyncpa %s2404, 1

</llo_original>
